<compile_context>
chip_gen: v7x
topology: tpu7x:2x2x1
jax: 0.10.0
libtpu: 0.0.40
codegen_flags: <defaults>
</compile_context>

<pallas_src>
import functools

import jax
import jax.numpy as jnp
from jax.experimental import pallas as pl
from jax.experimental.pallas import tpu as pltpu


def _round_up(n, m):
    return ((n + m - 1) // m) * m


def _ae_kernel(x_ref, w1_ref, b1_ref, w2_ref, b2_ref, w3_ref, b3_ref,
               w4_ref, b4_ref, o_ref, *, n_sub):
    """One batch tile through the whole 4-layer MLP.

    x is loaded in f32 and cast to the weights' dtype in-register (no extra
    wrapper cast pass over HBM); all dots accumulate in f32 on the MXU and the
    bias + ReLU epilogues run in f32 on the VPU.  The tile is split into
    `n_sub` row sub-tiles handled in one unrolled basic block so layer k+1 of
    sub-tile s can overlap layer k of sub-tile s+1.
    """
    cdt = w1_ref.dtype
    w1, w2, w3, w4 = w1_ref[...], w2_ref[...], w3_ref[...], w4_ref[...]
    b1, b2, b3, b4 = b1_ref[...], b2_ref[...], b3_ref[...], b4_ref[...]
    rows = x_ref.shape[0]
    sub = rows // n_sub
    for s in range(n_sub):
        r0 = s * sub  # static, multiple of 8
        xs = x_ref[pl.ds(r0, sub), :].astype(cdt)
        # encoder: Linear(D, 64) + ReLU
        h = jnp.dot(xs, w1, preferred_element_type=jnp.float32)
        h = jnp.maximum(h + b1, 0.0)
        # encoder: Linear(64, 32) + ReLU
        h = jnp.dot(h.astype(cdt), w2, preferred_element_type=jnp.float32)
        h = jnp.maximum(h + b2, 0.0)
        # decoder: Linear(32, 64) + ReLU
        h = jnp.dot(h.astype(cdt), w3, preferred_element_type=jnp.float32)
        h = jnp.maximum(h + b3, 0.0)
        # decoder: Linear(64, D)   (no activation, matches nn.Sequential)
        y = jnp.dot(h.astype(cdt), w4, preferred_element_type=jnp.float32)
        o_ref[pl.ds(r0, sub), :] = (y + b4).astype(o_ref.dtype)


def _vmem_budget_bytes():
    """Generation-aware VMEM budget (~2/3 of physical, capped at 96 MiB)."""
    cap = 64 << 20  # conservative fallback = v7x per-TC physical VMEM
    try:
        info = pltpu.get_tpu_info()
        cap = int(getattr(info, "vmem_capacity_bytes", cap))
    except Exception:
        pass
    return int(min(cap * 2 // 3, 96 << 20))


@functools.partial(jax.jit, static_argnames=("batch_tile", "out_bf16"))
def autoencoder_forward(x, params, *, batch_tile=512, out_bf16=False):
    """x: [B, D] float32.

    params: dict w1..w4 ([in, out]) / b1..b4 ([1, out]) already cast by
    prepare_params (weights in the MXU compute dtype, biases f32).
    """
    B, D = x.shape
    w1, b1 = params["w1"], params["b1"]
    w2, b2 = params["w2"], params["b2"]
    w3, b3 = params["w3"], params["b3"]
    w4, b4 = params["w4"], params["b4"]
    out_dtype = jnp.bfloat16 if out_bf16 else x.dtype

    # --- batch-tile sizing ----------------------------------------------
    # Size the tile to the VMEM budget (double-buffered x + out tiles plus
    # resident weights), then keep the step count even when > 1 so v7x's two
    # TensorCores get balanced "parallel" work.
    wb_bytes = sum(int(a.size) * a.dtype.itemsize
                   for a in (w1, w2, w3, w4, b1, b2, b3, b4))
    bytes_per_row = D * (x.dtype.itemsize + jnp.dtype(out_dtype).itemsize)
    slack = 4 << 20
    budget = _vmem_budget_bytes()
    avail = max(budget - 2 * wb_bytes - slack, 1 << 20)
    max_tile = max(8, (avail // (2 * bytes_per_row)) // 8 * 8)
    tile = max(8, (min(batch_tile, max_tile, _round_up(B, 8)) // 8) * 8)
    steps = -(-B // tile)
    if steps > 1 and steps % 2 == 1:  # even step count for megacore balance
        steps += 1
        tile = max(8, _round_up(-(-B // steps), 8))
        steps = -(-B // tile)

    # In-kernel sub-tiling: only when the tile is big enough for the
    # interleave to pay off (and splits cleanly into 8-row-aligned halves).
    n_sub = 2 if (tile % 16 == 0 and tile >= 128) else 1

    vmem_limit = int(min(max(2 * tile * bytes_per_row + 2 * wb_bytes + slack,
                             16 << 20), budget))

    def full_spec(arr):
        nd = arr.ndim
        return pl.BlockSpec(arr.shape, lambda i, _nd=nd: (0,) * _nd)

    out = pl.pallas_call(
        functools.partial(_ae_kernel, n_sub=n_sub),
        out_shape=jax.ShapeDtypeStruct((B, D), out_dtype),
        grid_spec=pltpu.PrefetchScalarGridSpec(
            num_scalar_prefetch=0,
            grid=(steps,),
            in_specs=[
                pl.BlockSpec((tile, D), lambda i: (i, 0)),  # x tile (f32)
                # constant index_map -> weights fetched once, kept resident
                full_spec(w1), full_spec(b1),
                full_spec(w2), full_spec(b2),
                full_spec(w3), full_spec(b3),
                full_spec(w4), full_spec(b4),
            ],
            out_specs=pl.BlockSpec((tile, D), lambda i: (i, 0)),
        ),
        compiler_params=pltpu.CompilerParams(
            dimension_semantics=("parallel",),
            vmem_limit_bytes=vmem_limit,
        ),
    )(x, w1, b1, w2, b2, w3, b3, w4, b4)
    return out


def init_params(key, input_dim):
    """Deterministic init matching PyTorch Linear default: U(-1/sqrt(fan_in), +)."""
    dims = [(input_dim, 64), (64, 32), (32, 64), (64, input_dim)]
    params = {}
    for idx, (fan_in, fan_out) in enumerate(dims, start=1):
        key, kw, kb = jax.random.split(key, 3)
        bound = 1.0 / float(fan_in) ** 0.5
        params[f"w{idx}"] = jax.random.uniform(
            kw, (fan_in, fan_out), jnp.float32, -bound, bound)
        params[f"b{idx}"] = jax.random.uniform(
            kb, (1, fan_out), jnp.float32, -bound, bound)
    return params


def prepare_params(params, use_bf16=True):
    """Cast weights ONCE (outside jit) to the MXU compute dtype; biases stay f32."""
    cdt = jnp.bfloat16 if use_bf16 else jnp.float32
    out = {}
    for i in range(1, 5):
        out[f"w{i}"] = params[f"w{i}"].astype(cdt)
        out[f"b{i}"] = params[f"b{i}"].astype(jnp.float32)
    return out


def reference_forward(x, p, compute_dtype=jnp.float32):
    def lin(h, w, b):
        return jnp.dot(h.astype(compute_dtype), w.astype(compute_dtype),
                       preferred_element_type=jnp.float32) + b
    h = jnp.maximum(lin(x, p["w1"], p["b1"]), 0.0)
    h = jnp.maximum(lin(h, p["w2"], p["b2"]), 0.0)
    h = jnp.maximum(lin(h, p["w3"], p["b3"]), 0.0)
    return lin(h, p["w4"], p["b4"])


if __name__ == "__main__":
    key = jax.random.PRNGKey(0)
    # Ragged batch + non-128-multiple D: exercises partial-block reads/writes
    # and the full-extent (masked) last-dim store path with zero wrapper pads.
    batch, input_dim = 200, 96
    key, kx = jax.random.split(key)
    x = jax.random.normal(kx, (batch, input_dim), jnp.float32)
    params = init_params(key, input_dim)
    prepped = prepare_params(params, use_bf16=True)

    # batch_tile=128 here so the small demo batch still runs >1 grid step
    # (partial last block + 2-way sub-tiling); default is 512 for real sizes.
    out = autoencoder_forward(x, prepped, batch_tile=128)
    out = jax.block_until_ready(out)
    assert out.shape == (batch, input_dim)
    assert out.dtype == jnp.float32

    # Tight check vs a reference using the same bf16-operand / f32-accumulate
    # recipe, plus a loose fidelity check vs the pure-f32 reference.
    ref_bf16 = reference_forward(x, params, jnp.bfloat16)
    ref_f32 = reference_forward(x, params, jnp.float32)
    assert jnp.allclose(out, ref_bf16, atol=2e-3, rtol=2e-3)
    assert jnp.allclose(out, ref_f32, atol=1e-1, rtol=1e-1)
    print("KERNEL_OK")
</pallas_src>

<mosaic_0001>
module attributes {stable_mosaic.version = 11 : i64} {
  func.func @_ae_kernel(%arg0: i32, %arg1: memref<128x96xf32, #tpu.memory_space<vmem>>, %arg2: memref<96x64xbf16, #tpu.memory_space<vmem>>, %arg3: memref<1x64xf32, #tpu.memory_space<vmem>>, %arg4: memref<64x32xbf16, #tpu.memory_space<vmem>>, %arg5: memref<1x32xf32, #tpu.memory_space<vmem>>, %arg6: memref<32x64xbf16, #tpu.memory_space<vmem>>, %arg7: memref<1x64xf32, #tpu.memory_space<vmem>>, %arg8: memref<64x96xbf16, #tpu.memory_space<vmem>>, %arg9: memref<1x96xf32, #tpu.memory_space<vmem>>, %arg10: memref<128x96xf32, #tpu.memory_space<vmem>>) attributes {dimension_semantics = [#tpu.dimension_semantics<parallel>], iteration_bounds = array<i64: 2>, scalar_prefetch = 0 : i64, scratch_operands = 0 : i64, tpu.core_type = #tpu.core_type<tc>, window_params = [{transform_indices = @transform_0, window_bounds = array<i64: 128, 96>}, {pipeline_mode = #tpu.pipeline_mode<synchronous>, transform_indices = @transform_1, window_bounds = array<i64: 96, 64>}, {pipeline_mode = #tpu.pipeline_mode<synchronous>, transform_indices = @transform_2, window_bounds = array<i64: 1, 64>}, {pipeline_mode = #tpu.pipeline_mode<synchronous>, transform_indices = @transform_3, window_bounds = array<i64: 64, 32>}, {pipeline_mode = #tpu.pipeline_mode<synchronous>, transform_indices = @transform_4, window_bounds = array<i64: 1, 32>}, {pipeline_mode = #tpu.pipeline_mode<synchronous>, transform_indices = @transform_5, window_bounds = array<i64: 32, 64>}, {pipeline_mode = #tpu.pipeline_mode<synchronous>, transform_indices = @transform_6, window_bounds = array<i64: 1, 64>}, {pipeline_mode = #tpu.pipeline_mode<synchronous>, transform_indices = @transform_7, window_bounds = array<i64: 64, 96>}, {pipeline_mode = #tpu.pipeline_mode<synchronous>, transform_indices = @transform_8, window_bounds = array<i64: 1, 96>}, {transform_indices = @transform_9, window_bounds = array<i64: 128, 96>}]} {
    %c0 = arith.constant 0 : index
    %c0_0 = arith.constant 0 : index
    %0 = vector.load %arg2[%c0, %c0_0] : memref<96x64xbf16, #tpu.memory_space<vmem>>, vector<96x64xbf16>
    %c0_1 = arith.constant 0 : index
    %c0_2 = arith.constant 0 : index
    %1 = vector.load %arg4[%c0_1, %c0_2] : memref<64x32xbf16, #tpu.memory_space<vmem>>, vector<64x32xbf16>
    %c0_3 = arith.constant 0 : index
    %c0_4 = arith.constant 0 : index
    %2 = vector.load %arg6[%c0_3, %c0_4] : memref<32x64xbf16, #tpu.memory_space<vmem>>, vector<32x64xbf16>
    %c0_5 = arith.constant 0 : index
    %c0_6 = arith.constant 0 : index
    %3 = vector.load %arg8[%c0_5, %c0_6] : memref<64x96xbf16, #tpu.memory_space<vmem>>, vector<64x96xbf16>
    %c0_7 = arith.constant 0 : index
    %c0_8 = arith.constant 0 : index
    %4 = vector.load %arg3[%c0_7, %c0_8] : memref<1x64xf32, #tpu.memory_space<vmem>>, vector<1x64xf32>
    %c0_9 = arith.constant 0 : index
    %c0_10 = arith.constant 0 : index
    %5 = vector.load %arg5[%c0_9, %c0_10] : memref<1x32xf32, #tpu.memory_space<vmem>>, vector<1x32xf32>
    %c0_11 = arith.constant 0 : index
    %c0_12 = arith.constant 0 : index
    %6 = vector.load %arg7[%c0_11, %c0_12] : memref<1x64xf32, #tpu.memory_space<vmem>>, vector<1x64xf32>
    %c0_13 = arith.constant 0 : index
    %c0_14 = arith.constant 0 : index
    %7 = vector.load %arg9[%c0_13, %c0_14] : memref<1x96xf32, #tpu.memory_space<vmem>>, vector<1x96xf32>
    %c0_15 = arith.constant 0 : index
    %c0_16 = arith.constant 0 : index
    %8 = vector.load %arg1[%c0_15, %c0_16] : memref<128x96xf32, #tpu.memory_space<vmem>>, vector<64x96xf32>
    %9 = arith.truncf %8 : vector<64x96xf32> to vector<64x96xbf16>
    %cst = arith.constant dense<0.000000e+00> : vector<64x64xf32>
    %10 = tpu.matmul %9, %0, %cst {dimension_numbers = #tpu.dot_dimension_numbers<[1], [0], [0], [1], [0, 0, 1, 1], [], []>} : vector<64x96xbf16>, vector<96x64xbf16>, vector<64x64xf32> -> vector<64x64xf32>
    %11 = vector.broadcast %4 : vector<1x64xf32> to vector<64x64xf32>
    %12 = arith.addf %10, %11 : vector<64x64xf32>
    %cst_17 = arith.constant 0.000000e+00 : f32
    %13 = vector.broadcast %cst_17 : f32 to vector<64x64xf32>
    %14 = arith.maximumf %12, %13 : vector<64x64xf32>
    %15 = arith.truncf %14 : vector<64x64xf32> to vector<64x64xbf16>
    %cst_18 = arith.constant dense<0.000000e+00> : vector<64x32xf32>
    %16 = tpu.matmul %15, %1, %cst_18 {dimension_numbers = #tpu.dot_dimension_numbers<[1], [0], [0], [1], [0, 0, 1, 1], [], []>} : vector<64x64xbf16>, vector<64x32xbf16>, vector<64x32xf32> -> vector<64x32xf32>
    %17 = vector.broadcast %5 : vector<1x32xf32> to vector<64x32xf32>
    %18 = arith.addf %16, %17 : vector<64x32xf32>
    %cst_19 = arith.constant 0.000000e+00 : f32
    %19 = vector.broadcast %cst_19 : f32 to vector<64x32xf32>
    %20 = arith.maximumf %18, %19 : vector<64x32xf32>
    %21 = arith.truncf %20 : vector<64x32xf32> to vector<64x32xbf16>
    %cst_20 = arith.constant dense<0.000000e+00> : vector<64x64xf32>
    %22 = tpu.matmul %21, %2, %cst_20 {dimension_numbers = #tpu.dot_dimension_numbers<[1], [0], [0], [1], [0, 0, 1, 1], [], []>} : vector<64x32xbf16>, vector<32x64xbf16>, vector<64x64xf32> -> vector<64x64xf32>
    %23 = vector.broadcast %6 : vector<1x64xf32> to vector<64x64xf32>
    %24 = arith.addf %22, %23 : vector<64x64xf32>
    %cst_21 = arith.constant 0.000000e+00 : f32
    %25 = vector.broadcast %cst_21 : f32 to vector<64x64xf32>
    %26 = arith.maximumf %24, %25 : vector<64x64xf32>
    %27 = arith.truncf %26 : vector<64x64xf32> to vector<64x64xbf16>
    %cst_22 = arith.constant dense<0.000000e+00> : vector<64x96xf32>
    %28 = tpu.matmul %27, %3, %cst_22 {dimension_numbers = #tpu.dot_dimension_numbers<[1], [0], [0], [1], [0, 0, 1, 1], [], []>} : vector<64x64xbf16>, vector<64x96xbf16>, vector<64x96xf32> -> vector<64x96xf32>
    %29 = vector.broadcast %7 : vector<1x96xf32> to vector<64x96xf32>
    %30 = arith.addf %28, %29 : vector<64x96xf32>
    %c0_23 = arith.constant 0 : index
    %c0_24 = arith.constant 0 : index
    %31 = vector.load %arg10[%c0_23, %c0_24] : memref<128x96xf32, #tpu.memory_space<vmem>>, vector<64x96xf32>
    tpu.vector_store %arg10[%c0_23, %c0_24], %30 {strides = array<i32>} : memref<128x96xf32, #tpu.memory_space<vmem>>, vector<64x96xf32>,
    %c64 = arith.constant 64 : index
    %c0_25 = arith.constant 0 : index
    %32 = vector.load %arg1[%c64, %c0_25] : memref<128x96xf32, #tpu.memory_space<vmem>>, vector<64x96xf32>
    %33 = arith.truncf %32 : vector<64x96xf32> to vector<64x96xbf16>
    %cst_26 = arith.constant dense<0.000000e+00> : vector<64x64xf32>
    %34 = tpu.matmul %33, %0, %cst_26 {dimension_numbers = #tpu.dot_dimension_numbers<[1], [0], [0], [1], [0, 0, 1, 1], [], []>} : vector<64x96xbf16>, vector<96x64xbf16>, vector<64x64xf32> -> vector<64x64xf32>
    %35 = vector.broadcast %4 : vector<1x64xf32> to vector<64x64xf32>
    %36 = arith.addf %34, %35 : vector<64x64xf32>
    %cst_27 = arith.constant 0.000000e+00 : f32
    %37 = vector.broadcast %cst_27 : f32 to vector<64x64xf32>
    %38 = arith.maximumf %36, %37 : vector<64x64xf32>
    %39 = arith.truncf %38 : vector<64x64xf32> to vector<64x64xbf16>
    %cst_28 = arith.constant dense<0.000000e+00> : vector<64x32xf32>
    %40 = tpu.matmul %39, %1, %cst_28 {dimension_numbers = #tpu.dot_dimension_numbers<[1], [0], [0], [1], [0, 0, 1, 1], [], []>} : vector<64x64xbf16>, vector<64x32xbf16>, vector<64x32xf32> -> vector<64x32xf32>
    %41 = vector.broadcast %5 : vector<1x32xf32> to vector<64x32xf32>
    %42 = arith.addf %40, %41 : vector<64x32xf32>
    %cst_29 = arith.constant 0.000000e+00 : f32
    %43 = vector.broadcast %cst_29 : f32 to vector<64x32xf32>
    %44 = arith.maximumf %42, %43 : vector<64x32xf32>
    %45 = arith.truncf %44 : vector<64x32xf32> to vector<64x32xbf16>
    %cst_30 = arith.constant dense<0.000000e+00> : vector<64x64xf32>
    %46 = tpu.matmul %45, %2, %cst_30 {dimension_numbers = #tpu.dot_dimension_numbers<[1], [0], [0], [1], [0, 0, 1, 1], [], []>} : vector<64x32xbf16>, vector<32x64xbf16>, vector<64x64xf32> -> vector<64x64xf32>
    %47 = vector.broadcast %6 : vector<1x64xf32> to vector<64x64xf32>
    %48 = arith.addf %46, %47 : vector<64x64xf32>
    %cst_31 = arith.constant 0.000000e+00 : f32
    %49 = vector.broadcast %cst_31 : f32 to vector<64x64xf32>
    %50 = arith.maximumf %48, %49 : vector<64x64xf32>
    %51 = arith.truncf %50 : vector<64x64xf32> to vector<64x64xbf16>
    %cst_32 = arith.constant dense<0.000000e+00> : vector<64x96xf32>
    %52 = tpu.matmul %51, %3, %cst_32 {dimension_numbers = #tpu.dot_dimension_numbers<[1], [0], [0], [1], [0, 0, 1, 1], [], []>} : vector<64x64xbf16>, vector<64x96xbf16>, vector<64x96xf32> -> vector<64x96xf32>
    %53 = vector.broadcast %7 : vector<1x96xf32> to vector<64x96xf32>
    %54 = arith.addf %52, %53 : vector<64x96xf32>
    %c64_33 = arith.constant 64 : index
    %c0_34 = arith.constant 0 : index
    %55 = vector.load %arg10[%c64_33, %c0_34] : memref<128x96xf32, #tpu.memory_space<vmem>>, vector<64x96xf32>
    tpu.vector_store %arg10[%c64_33, %c0_34], %54 {strides = array<i32>} : memref<128x96xf32, #tpu.memory_space<vmem>>, vector<64x96xf32>,
    return
  }
  func.func @transform_0(%arg0: i32) -> (i32, i32) {
    %c0_i32 = arith.constant 0 : i32
    %c0_i32_0 = arith.constant 0 : i32
    return %arg0, %c0_i32 : i32, i32
  }
  func.func @transform_1(%arg0: i32) -> (i32, i32) {
    %c0_i32 = arith.constant 0 : i32
    %c0_i32_0 = arith.constant 0 : i32
    %c0_i32_1 = arith.constant 0 : i32
    return %c0_i32, %c0_i32_0 : i32, i32
  }
  func.func @transform_2(%arg0: i32) -> (i32, i32) {
    %c0_i32 = arith.constant 0 : i32
    %c0_i32_0 = arith.constant 0 : i32
    %c0_i32_1 = arith.constant 0 : i32
    return %c0_i32, %c0_i32_0 : i32, i32
  }
  func.func @transform_3(%arg0: i32) -> (i32, i32) {
    %c0_i32 = arith.constant 0 : i32
    %c0_i32_0 = arith.constant 0 : i32
    %c0_i32_1 = arith.constant 0 : i32
    return %c0_i32, %c0_i32_0 : i32, i32
  }
  func.func @transform_4(%arg0: i32) -> (i32, i32) {
    %c0_i32 = arith.constant 0 : i32
    %c0_i32_0 = arith.constant 0 : i32
    %c0_i32_1 = arith.constant 0 : i32
    return %c0_i32, %c0_i32_0 : i32, i32
  }
  func.func @transform_5(%arg0: i32) -> (i32, i32) {
    %c0_i32 = arith.constant 0 : i32
    %c0_i32_0 = arith.constant 0 : i32
    %c0_i32_1 = arith.constant 0 : i32
    return %c0_i32, %c0_i32_0 : i32, i32
  }
  func.func @transform_6(%arg0: i32) -> (i32, i32) {
    %c0_i32 = arith.constant 0 : i32
    %c0_i32_0 = arith.constant 0 : i32
    %c0_i32_1 = arith.constant 0 : i32
    return %c0_i32, %c0_i32_0 : i32, i32
  }
  func.func @transform_7(%arg0: i32) -> (i32, i32) {
    %c0_i32 = arith.constant 0 : i32
    %c0_i32_0 = arith.constant 0 : i32
    %c0_i32_1 = arith.constant 0 : i32
    return %c0_i32, %c0_i32_0 : i32, i32
  }
  func.func @transform_8(%arg0: i32) -> (i32, i32) {
    %c0_i32 = arith.constant 0 : i32
    %c0_i32_0 = arith.constant 0 : i32
    %c0_i32_1 = arith.constant 0 : i32
    return %c0_i32, %c0_i32_0 : i32, i32
  }
  func.func @transform_9(%arg0: i32) -> (i32, i32) {
    %c0_i32 = arith.constant 0 : i32
    %c0_i32_0 = arith.constant 0 : i32
    return %arg0, %c0_i32 : i32, i32
  }
}

</mosaic_0001>

<llo_original>
// kernel: autoencoder_forward.1
$region0: #{autoencoder_forward.1}
  #allocation0 [shape = 'u32[]', space=smem, size = 0x4, offset = 0x4, fixed_abs, tag = 'smem constant byte address 0x4 - core index']
  #allocation1 [shape = 'u32[144,128]{1,0:T(1,128)}', space=vmem, size = 0x12000, scoped, tag = 'internal scratch']
  %s0 = inlined_call_operand.vmem [shape: f32[200,96], index: 0, kind: input, shape index: {}]
  %s1 = inlined_call_operand.vmem [shape: bf16[96,64], index: 1, kind: input, shape index: {}]
  %s2 = inlined_call_operand.vmem [shape: f32[1,64], index: 2, kind: input, shape index: {}]
  %s3 = inlined_call_operand.vmem [shape: bf16[64,32], index: 3, kind: input, shape index: {}]
  %s4 = inlined_call_operand.vmem [shape: f32[1,32], index: 4, kind: input, shape index: {}]
  %s5 = inlined_call_operand.vmem [shape: bf16[32,64], index: 5, kind: input, shape index: {}]
  %s6 = inlined_call_operand.vmem [shape: f32[1,64], index: 6, kind: input, shape index: {}]
  %s7 = inlined_call_operand.vmem [shape: bf16[64,96], index: 7, kind: input, shape index: {}]
  %s8 = inlined_call_operand.vmem [shape: f32[1,96], index: 8, kind: input, shape index: {}]
  %s9 = inlined_call_operand.vmem [shape: f32[200,96], index: 9, kind: output, shape index: {}]
  %s10 = sld [smem:[#allocation0]]
  $region117: #{autoencoder_forward.1} parent=0
    _
  %s12 = ssub.s32 1, %s10
  %s13 = scalar_select 0, %s12, %s10
  $region1: #{autoencoder_forward.1} parent=0
    #allocation2 [shape = 'u8[131072]{0}', space=vmem, size = 0x20000, scoped, tag = 'output window, operand 0']
    loop: start=0, step=1, limit=4
    $region2: #{autoencoder_forward.1} parent=1 // loop_pre_header
      _
    $region3: #{autoencoder_forward.1} parent=1 // loop_header
      %s15 = sphi 0, %s19
      %p16 = scmp.ge.s32.totalorder %s15, 4
      %s25 = sphi 0, %s27
      %s28 = sphi 0, %s25
      %s29 = sphi 0, %s28
      %s45 = sphi 0, %s29
      %s49 = sphi 0, %s49
      %s51 = sphi 0, %s49
      %s52 = sphi 0, %s51
      %s66 = sphi 0, %s52
      %s70 = sphi 0, %s70
      %s72 = sphi 0, %s70
      %s73 = sphi 0, %s72
      %s87 = sphi 0, %s73
      %s91 = sphi 0, %s91
      %s93 = sphi 0, %s91
      %s94 = sphi 0, %s93
      %s108 = sphi 0, %s94
      %s112 = sphi 0, %s112
      %s114 = sphi 0, %s112
      %s115 = sphi 0, %s114
      %s129 = sphi 0, %s115
      %s133 = sphi 0, %s133
      %s135 = sphi 0, %s133
      %s136 = sphi 0, %s135
      %s150 = sphi 0, %s136
      %s154 = sphi 0, %s154
      %s156 = sphi 0, %s154
      %s157 = sphi 0, %s156
      %s171 = sphi 0, %s157
      %s175 = sphi 0, %s175
      %s177 = sphi 0, %s175
      %s178 = sphi 0, %s177
      %s192 = sphi 0, %s178
      %s196 = sphi 0, %s196
      %s198 = sphi 0, %s196
      %s199 = sphi 0, %s198
      %s213 = sphi 0, %s199
      %s219 = sphi 0, %s221
      %s222 = sphi 0, %s219
      %s223 = sphi 0, %s222
      %s239 = sphi 0, %s223
    $region4: #{autoencoder_forward.1} parent=1 // loop_header_branch
      %18 = sbr.rel (%p16) target = $region8
    $region5: #{autoencoder_forward.1} parent=1 // loop_body
      %s20 = ssub.s32 %s15, 1
      %s21 = ssub.s32 %s15, 2
      %s22 = sadd.s32 %s15, 1
      %s23 = ssub.s32 %s15, %s22
      %p24 = scmp.eq.s32.totalorder %s23, 0
      %s26 = sadd.s32 %s25, 1
      %s27 = scalar_select %p24, %s25, %s26
      %p30 = pneg %p24
      %p31 = scmp.eq.s32.totalorder %s15, 1
      %p32 = por %p30, %p31
      %p33 = scmp.ne.s32.totalorder %s25, %s28
      %p34 = scmp.eq.s32.totalorder %s15, 0
      %p35 = por %p33, %p34
      %p36 = scmp.ne.s32.totalorder %s25, %s28
      %p37 = scmp.eq.s32.totalorder %s20, 1
      %p38 = por %p36, %p37
      %p39 = scmp.ne.s32.totalorder %s28, %s29
      %p40 = scmp.eq.s32.totalorder %s20, 0
      %p41 = por %p39, %p40
      %p42 = scmp.ne.s32.totalorder %s28, %s29
      %p43 = scmp.eq.s32.totalorder %s21, 1
      %p44 = por %p42, %p43
      %p46 = scmp.ne.s32.totalorder %s29, %s45
      %p47 = scmp.eq.s32.totalorder %s21, 0
      %p48 = por %p46, %p47
      %s50 = sadd.s32 %s49, 1
      %p53 = scmp.eq.s32.totalorder %s15, 1
      %p54 = scmp.ne.s32.totalorder %s49, %s51
      %p55 = scmp.eq.s32.totalorder %s15, 0
      %p56 = por %p54, %p55
      %p57 = scmp.ne.s32.totalorder %s49, %s51
      %p58 = scmp.eq.s32.totalorder %s20, 1
      %p59 = por %p57, %p58
      %p60 = scmp.ne.s32.totalorder %s51, %s52
      %p61 = scmp.eq.s32.totalorder %s20, 0
      %p62 = por %p60, %p61
      %p63 = scmp.ne.s32.totalorder %s51, %s52
      %p64 = scmp.eq.s32.totalorder %s21, 1
      %p65 = por %p63, %p64
      %p67 = scmp.ne.s32.totalorder %s52, %s66
      %p68 = scmp.eq.s32.totalorder %s21, 0
      %p69 = por %p67, %p68
      %s71 = sadd.s32 %s70, 1
      %p74 = scmp.eq.s32.totalorder %s15, 1
      %p75 = scmp.ne.s32.totalorder %s70, %s72
      %p76 = scmp.eq.s32.totalorder %s15, 0
      %p77 = por %p75, %p76
      %p78 = scmp.ne.s32.totalorder %s70, %s72
      %p79 = scmp.eq.s32.totalorder %s20, 1
      %p80 = por %p78, %p79
      %p81 = scmp.ne.s32.totalorder %s72, %s73
      %p82 = scmp.eq.s32.totalorder %s20, 0
      %p83 = por %p81, %p82
      %p84 = scmp.ne.s32.totalorder %s72, %s73
      %p85 = scmp.eq.s32.totalorder %s21, 1
      %p86 = por %p84, %p85
      %p88 = scmp.ne.s32.totalorder %s73, %s87
      %p89 = scmp.eq.s32.totalorder %s21, 0
      %p90 = por %p88, %p89
      %s92 = sadd.s32 %s91, 1
      %p95 = scmp.eq.s32.totalorder %s15, 1
      %p96 = scmp.ne.s32.totalorder %s91, %s93
      %p97 = scmp.eq.s32.totalorder %s15, 0
      %p98 = por %p96, %p97
      %p99 = scmp.ne.s32.totalorder %s91, %s93
      %p100 = scmp.eq.s32.totalorder %s20, 1
      %p101 = por %p99, %p100
      %p102 = scmp.ne.s32.totalorder %s93, %s94
      %p103 = scmp.eq.s32.totalorder %s20, 0
      %p104 = por %p102, %p103
      %p105 = scmp.ne.s32.totalorder %s93, %s94
      %p106 = scmp.eq.s32.totalorder %s21, 1
      %p107 = por %p105, %p106
      %p109 = scmp.ne.s32.totalorder %s94, %s108
      %p110 = scmp.eq.s32.totalorder %s21, 0
      %p111 = por %p109, %p110
      %s113 = sadd.s32 %s112, 1
      %p116 = scmp.eq.s32.totalorder %s15, 1
      %p117 = scmp.ne.s32.totalorder %s112, %s114
      %p118 = scmp.eq.s32.totalorder %s15, 0
      %p119 = por %p117, %p118
      %p120 = scmp.ne.s32.totalorder %s112, %s114
      %p121 = scmp.eq.s32.totalorder %s20, 1
      %p122 = por %p120, %p121
      %p123 = scmp.ne.s32.totalorder %s114, %s115
      %p124 = scmp.eq.s32.totalorder %s20, 0
      %p125 = por %p123, %p124
      %p126 = scmp.ne.s32.totalorder %s114, %s115
      %p127 = scmp.eq.s32.totalorder %s21, 1
      %p128 = por %p126, %p127
      %p130 = scmp.ne.s32.totalorder %s115, %s129
      %p131 = scmp.eq.s32.totalorder %s21, 0
      %p132 = por %p130, %p131
      %s134 = sadd.s32 %s133, 1
      %p137 = scmp.eq.s32.totalorder %s15, 1
      %p138 = scmp.ne.s32.totalorder %s133, %s135
      %p139 = scmp.eq.s32.totalorder %s15, 0
      %p140 = por %p138, %p139
      %p141 = scmp.ne.s32.totalorder %s133, %s135
      %p142 = scmp.eq.s32.totalorder %s20, 1
      %p143 = por %p141, %p142
      %p144 = scmp.ne.s32.totalorder %s135, %s136
      %p145 = scmp.eq.s32.totalorder %s20, 0
      %p146 = por %p144, %p145
      %p147 = scmp.ne.s32.totalorder %s135, %s136
      %p148 = scmp.eq.s32.totalorder %s21, 1
      %p149 = por %p147, %p148
      %p151 = scmp.ne.s32.totalorder %s136, %s150
      %p152 = scmp.eq.s32.totalorder %s21, 0
      %p153 = por %p151, %p152
      %s155 = sadd.s32 %s154, 1
      %p158 = scmp.eq.s32.totalorder %s15, 1
      %p159 = scmp.ne.s32.totalorder %s154, %s156
      %p160 = scmp.eq.s32.totalorder %s15, 0
      %p161 = por %p159, %p160
      %p162 = scmp.ne.s32.totalorder %s154, %s156
      %p163 = scmp.eq.s32.totalorder %s20, 1
      %p164 = por %p162, %p163
      %p165 = scmp.ne.s32.totalorder %s156, %s157
      %p166 = scmp.eq.s32.totalorder %s20, 0
      %p167 = por %p165, %p166
      %p168 = scmp.ne.s32.totalorder %s156, %s157
      %p169 = scmp.eq.s32.totalorder %s21, 1
      %p170 = por %p168, %p169
      %p172 = scmp.ne.s32.totalorder %s157, %s171
      %p173 = scmp.eq.s32.totalorder %s21, 0
      %p174 = por %p172, %p173
      %s176 = sadd.s32 %s175, 1
      %p179 = scmp.eq.s32.totalorder %s15, 1
      %p180 = scmp.ne.s32.totalorder %s175, %s177
      %p181 = scmp.eq.s32.totalorder %s15, 0
      %p182 = por %p180, %p181
      %p183 = scmp.ne.s32.totalorder %s175, %s177
      %p184 = scmp.eq.s32.totalorder %s20, 1
      %p185 = por %p183, %p184
      %p186 = scmp.ne.s32.totalorder %s177, %s178
      %p187 = scmp.eq.s32.totalorder %s20, 0
      %p188 = por %p186, %p187
      %p189 = scmp.ne.s32.totalorder %s177, %s178
      %p190 = scmp.eq.s32.totalorder %s21, 1
      %p191 = por %p189, %p190
      %p193 = scmp.ne.s32.totalorder %s178, %s192
      %p194 = scmp.eq.s32.totalorder %s21, 0
      %p195 = por %p193, %p194
      %s197 = sadd.s32 %s196, 1
      %p200 = scmp.eq.s32.totalorder %s15, 1
      %p201 = scmp.ne.s32.totalorder %s196, %s198
      %p202 = scmp.eq.s32.totalorder %s15, 0
      %p203 = por %p201, %p202
      %p204 = scmp.ne.s32.totalorder %s196, %s198
      %p205 = scmp.eq.s32.totalorder %s20, 1
      %p206 = por %p204, %p205
      %p207 = scmp.ne.s32.totalorder %s198, %s199
      %p208 = scmp.eq.s32.totalorder %s20, 0
      %p209 = por %p207, %p208
      %p210 = scmp.ne.s32.totalorder %s198, %s199
      %p211 = scmp.eq.s32.totalorder %s21, 1
      %p212 = por %p210, %p211
      %p214 = scmp.ne.s32.totalorder %s199, %s213
      %p215 = scmp.eq.s32.totalorder %s21, 0
      %p216 = por %p214, %p215
      %s217 = ssub.s32 %s15, %s22
      %p218 = scmp.eq.s32.totalorder %s217, 0
      %s220 = sadd.s32 %s219, 1
      %s221 = scalar_select %p218, %s219, %s220
      %p224 = pneg %p218
      %p225 = scmp.eq.s32.totalorder %s15, 1
      %p226 = por %p224, %p225
      %p227 = scmp.ne.s32.totalorder %s219, %s222
      %p228 = scmp.eq.s32.totalorder %s15, 0
      %p229 = por %p227, %p228
      %p230 = scmp.ne.s32.totalorder %s219, %s222
      %p231 = scmp.eq.s32.totalorder %s20, 1
      %p232 = por %p230, %p231
      %p233 = scmp.ne.s32.totalorder %s222, %s223
      %p234 = scmp.eq.s32.totalorder %s20, 0
      %p235 = por %p233, %p234
      %p236 = scmp.ne.s32.totalorder %s222, %s223
      %p237 = scmp.eq.s32.totalorder %s21, 1
      %p238 = por %p236, %p237
      %p240 = scmp.ne.s32.totalorder %s223, %s239
      %p241 = scmp.eq.s32.totalorder %s21, 0
      %p242 = por %p240, %p241
      %p243 = scmp.le.s32.totalorder 1, %s15
      %p244 = scmp.lt.s32.totalorder %s15, 3
      %p245 = pnand %p243, %p244
      %p246 = pneg %p245
      // Predicated region
      $region9: #{autoencoder_forward.1} parent=5 // pred_check
        _
      $region10: #{autoencoder_forward.1} parent=5 // pred_check_branch
        %248 = sbr.rel (%p245) target = $region12
      $region11: #{autoencoder_forward.1} parent=5 // pred_region
        %s249 = ssub.s32 %s15, 1
        // Predicated region
        $region13: #{autoencoder_forward.1} parent=11 // pred_check
          %p250 = pneg %p62
        $region14: #{autoencoder_forward.1} parent=11 // pred_check_branch
          %252 = sbr.rel (%p250) target = $region16
        $region15: #{autoencoder_forward.1} parent=11 // pred_region
          _
        $region16: #{autoencoder_forward.1} parent=11 // pred_fallthru
          _
        // Predicated region
        $region17: #{autoencoder_forward.1} parent=11 // pred_check
          %p253 = pneg %p83
        $region18: #{autoencoder_forward.1} parent=11 // pred_check_branch
          %255 = sbr.rel (%p253) target = $region20
        $region19: #{autoencoder_forward.1} parent=11 // pred_region
          _
        $region20: #{autoencoder_forward.1} parent=11 // pred_fallthru
          _
        // Predicated region
        $region21: #{autoencoder_forward.1} parent=11 // pred_check
          %p256 = pneg %p104
        $region22: #{autoencoder_forward.1} parent=11 // pred_check_branch
          %258 = sbr.rel (%p256) target = $region24
        $region23: #{autoencoder_forward.1} parent=11 // pred_region
          _
        $region24: #{autoencoder_forward.1} parent=11 // pred_fallthru
          _
        // Predicated region
        $region25: #{autoencoder_forward.1} parent=11 // pred_check
          %p259 = pneg %p125
        $region26: #{autoencoder_forward.1} parent=11 // pred_check_branch
          %261 = sbr.rel (%p259) target = $region28
        $region27: #{autoencoder_forward.1} parent=11 // pred_region
          _
        $region28: #{autoencoder_forward.1} parent=11 // pred_fallthru
          _
        // Predicated region
        $region29: #{autoencoder_forward.1} parent=11 // pred_check
          %p262 = pneg %p146
        $region30: #{autoencoder_forward.1} parent=11 // pred_check_branch
          %264 = sbr.rel (%p262) target = $region32
        $region31: #{autoencoder_forward.1} parent=11 // pred_region
          _
        $region32: #{autoencoder_forward.1} parent=11 // pred_fallthru
          _
        // Predicated region
        $region33: #{autoencoder_forward.1} parent=11 // pred_check
          %p265 = pneg %p167
        $region34: #{autoencoder_forward.1} parent=11 // pred_check_branch
          %267 = sbr.rel (%p265) target = $region36
        $region35: #{autoencoder_forward.1} parent=11 // pred_region
          _
        $region36: #{autoencoder_forward.1} parent=11 // pred_fallthru
          _
        // Predicated region
        $region37: #{autoencoder_forward.1} parent=11 // pred_check
          %p268 = pneg %p188
        $region38: #{autoencoder_forward.1} parent=11 // pred_check_branch
          %270 = sbr.rel (%p268) target = $region40
        $region39: #{autoencoder_forward.1} parent=11 // pred_region
          _
        $region40: #{autoencoder_forward.1} parent=11 // pred_fallthru
          _
        // Predicated region
        $region41: #{autoencoder_forward.1} parent=11 // pred_check
          %p271 = pneg %p209
        $region42: #{autoencoder_forward.1} parent=11 // pred_check_branch
          %273 = sbr.rel (%p271) target = $region44
        $region43: #{autoencoder_forward.1} parent=11 // pred_region
          _
        $region44: #{autoencoder_forward.1} parent=11 // pred_fallthru
          _
      $region12: #{autoencoder_forward.1} parent=5 // pred_fallthru
        _
      %p274 = scmp.lt.s32.totalorder %s15, 2
      // Predicated region
      $region45: #{autoencoder_forward.1} parent=5 // pred_check
        %p275 = pneg %p274
      $region46: #{autoencoder_forward.1} parent=5 // pred_check_branch
        %277 = sbr.rel (%p275) target = $region48
      $region47: #{autoencoder_forward.1} parent=5 // pred_region
        // Predicated region
        $region49: #{autoencoder_forward.1} parent=47 // pred_check
          %p278 = pneg %p35
        $region50: #{autoencoder_forward.1} parent=47 // pred_check_branch
          %280 = sbr.rel (%p278) target = $region52
        $region51: #{autoencoder_forward.1} parent=47 // pred_region
          %s281 = smul.u32 16, %s15
          %s282 = ssub.s32 25, %s281
          %p283 = scmp.lt.s32.totalorder %s282, 16
          %s284 = scalar_select %p283, %s282, 16
          %s285 = smul.u32 128, %s284
          %p286 = scmp.lt.s32.totalorder %s281, 24
          %s287 = scalar_select %p286, %s281, 24
          %s288 = smul.addr %s287, 8
          %s289 = scalar_lea.vmem %s0, %s288
          %s290 = smul.u32 16, %s15
          %s291 = ssub.s32 25, %s290
          %p292 = scmp.lt.s32.totalorder %s291, 16
          %s293 = scalar_select %p292, %s291, 16
          %s294 = smul.u32 128, %s293
        $region52: #{autoencoder_forward.1} parent=47 // pred_fallthru
          _
      $region48: #{autoencoder_forward.1} parent=5 // pred_fallthru
        _
      %p295 = scmp.le.s32.totalorder 1, %s15
      %p296 = scmp.lt.s32.totalorder %s15, 3
      %p297 = pnand %p295, %p296
      %p298 = pneg %p297
      // Predicated region
      $region53: #{autoencoder_forward.1} parent=5 // pred_check
        _
      $region54: #{autoencoder_forward.1} parent=5 // pred_check_branch
        %300 = sbr.rel (%p297) target = $region56
      $region55: #{autoencoder_forward.1} parent=5 // pred_region
        %s301 = ssub.s32 %s15, 1
        %s302 = smul.u32 16, %s20
        %s303 = ssub.s32 25, %s302
        %p304 = scmp.lt.s32.totalorder %s303, 16
        %s305 = scalar_select %p304, %s303, 16
        %s306 = smul.u32 128, %s305
        %p307 = scmp.lt.s32.totalorder %s302, 24
        %s308 = scalar_select %p307, %s302, 24
        %s309 = smul.addr %s308, 8
        %s310 = scalar_lea.vmem %s0, %s309
        %p311 = pneg %p41
        %p312 = pneg %p38
        %p313 = pneg %p62
        %p314 = pneg %p59
        %p315 = pneg %p83
        %p316 = pneg %p80
        %p317 = pneg %p104
        %p318 = pneg %p101
        %p319 = pneg %p125
        %p320 = pneg %p122
        %p321 = pneg %p146
        %p322 = pneg %p143
        %p323 = pneg %p167
        %p324 = pneg %p164
        %p325 = pneg %p188
        %p326 = pneg %p185
        %p327 = pneg %p209
        %p328 = pneg %p206
        %p329 = pneg %p235
        %p330 = pneg %p232
        %s331 = sand.u32 %s222, 1
        %s332 = sand.u32 %s222, 1
        %s333 = smul.addr %s332, 128
        %s334 = scalar_lea.vmem [#allocation2], %s333
        %s335 = smul.u32 16, %s20
        %s336 = ssub.s32 25, %s335
        %p337 = scmp.lt.s32.totalorder %s336, 16
        %s338 = scalar_select %p337, %s336, 16
        %s339 = smul.u32 128, %s338
        %p340 = scmp.lt.s32.totalorder %s335, 24
        %s341 = scalar_select %p340, %s335, 24
        %s342 = smul.addr %s341, 8
        %s343 = scalar_lea.vmem %s0, %s342
        %s344 = smul.u32 16, %s20
        %s345 = ssub.s32 25, %s344
        %p346 = scmp.lt.s32.totalorder %s345, 16
        %s347 = scalar_select %p346, %s345, 16
        %s348 = smul.u32 128, %s347
        %s349 = smul.u32 16, %s20
        %s350 = ssub.s32 25, %s349
        %p351 = scmp.lt.s32.totalorder %s350, 16
        %s352 = scalar_select %p351, %s350, 16
        %s353 = smul.u32 128, %s352
        %v355 = vld [vmem:[%s1] sm:$0xf]
        %v356 = vld [vmem:[%s1 + $0x4] sm:$0xf]
        %v357 = vld [vmem:[%s1 + $0x8] sm:$0xf]
        %v358 = vld [vmem:[%s1 + $0xc] sm:$0xf]
        %v359 = vld [vmem:[%s1 + $0x10] sm:$0xf]
        %v360 = vld [vmem:[%s1 + $0x14] sm:$0xf]
        %v361 = vld [vmem:[%s1 + $0x18] sm:$0xf]
        %v362 = vld [vmem:[%s1 + $0x1c] sm:$0xf]
        %v363 = vld [vmem:[%s1 + $0x20] sm:$0xf]
        %v364 = vld [vmem:[%s1 + $0x24] sm:$0xf]
        %v365 = vld [vmem:[%s1 + $0x28] sm:$0xf]
        %v366 = vld [vmem:[%s1 + $0x2c] sm:$0xf]
        %v367 = vld [vmem:[%s3] sm:$0xf]
        %v368 = vld [vmem:[%s3 + $0x4] sm:$0xf]
        %v369 = vld [vmem:[%s3 + $0x8] sm:$0xf]
        %v370 = vld [vmem:[%s3 + $0xc] sm:$0xf]
        %v371 = vld [vmem:[%s3 + $0x10] sm:$0xf]
        %v372 = vld [vmem:[%s3 + $0x14] sm:$0xf]
        %v373 = vld [vmem:[%s3 + $0x18] sm:$0xf]
        %v374 = vld [vmem:[%s3 + $0x1c] sm:$0xf]
        %v375 = vld [vmem:[%s5] sm:$0xf]
        %v376 = vld [vmem:[%s5 + $0x4] sm:$0xf]
        %v377 = vld [vmem:[%s5 + $0x8] sm:$0xf]
        %v378 = vld [vmem:[%s5 + $0xc] sm:$0xf]
        %v379 = vld [vmem:[%s7] sm:$0xf]
        %v380 = vld [vmem:[%s7 + $0x4] sm:$0xf]
        %v381 = vld [vmem:[%s7 + $0x8] sm:$0xf]
        %v382 = vld [vmem:[%s7 + $0xc] sm:$0xf]
        %v383 = vld [vmem:[%s7 + $0x10] sm:$0xf]
        %v384 = vld [vmem:[%s7 + $0x14] sm:$0xf]
        %v385 = vld [vmem:[%s7 + $0x18] sm:$0xf]
        %v386 = vld [vmem:[%s7 + $0x1c] sm:$0xf]
        %v387 = vld [vmem:[%s2] sm:$0x1]
        %v388 = vld [vmem:[%s4] sm:$0x1]
        %v389 = vld [vmem:[%s6] sm:$0x1]
        %v390 = vld [vmem:[%s8] sm:$0x1]
        %v391 = vld [vmem:[%s343] sm:$0xff]
        %v392 = vld [vmem:[%s343 + $0x8] sm:$0xff]
        %v393 = vld [vmem:[%s343 + $0x10] sm:$0xff]
        %v394 = vld [vmem:[%s343 + $0x18] sm:$0xff]
        %v395 = vld [vmem:[%s343 + $0x20] sm:$0xff]
        %v396 = vld [vmem:[%s343 + $0x28] sm:$0xff]
        %v397 = vld [vmem:[%s343 + $0x30] sm:$0xff]
        %v398 = vld [vmem:[%s343 + $0x38] sm:$0xff]
        %v399 = vpack.c.bf16 %v392, %v391
        %v400 = vpack.c.bf16 %v394, %v393
        %v401 = vpack.c.bf16 %v396, %v395
        %v402 = vpack.c.bf16 %v398, %v397
        %v404 = vlaneseq
        %v405 = vshrl.u32 %v404, 7
        %v406 = vsub.s32 0, %v405
        %v407 = vrot.slane %v387, %v406
        %v421 = vunpack.c.l.b16 %v355
        %v422 = vunpack.c.l.b16 %v356
        %v423 = vunpack.c.l.b16 %v357
        %v424 = vunpack.c.l.b16 %v358
        %v425 = vunpack.c.l.b16 %v359
        %v426 = vunpack.c.l.b16 %v360
        %v427 = vunpack.c.l.b16 %v361
        %v428 = vunpack.c.l.b16 %v362
        %v429 = vunpack.c.l.b16 %v363
        %v430 = vunpack.c.l.b16 %v364
        %v431 = vunpack.c.l.b16 %v365
        %v432 = vunpack.c.l.b16 %v366
        %v433 = vpack.c.b16 %v422, %v421
        %v434 = vpack.c.b16 %v424, %v423
        %v435 = vpack.c.b16 %v426, %v425
        %v436 = vpack.c.b16 %v428, %v427
        %v437 = vpack.c.b16 %v430, %v429
        %v438 = vpack.c.b16 %v432, %v431
        %vm445 = vcmask 785408
        %v447 = vsel %vm445, %v399, 0
        %v450 = vsel %vm445, %v400, 0
        %v453 = vsel %vm445, %v401, 0
        %v456 = vsel %vm445, %v402, 0
        %458 = vmatprep.subr.bf16.mxu0 0
        %459 = vmatpush1.bf16.msra.mxu0 %v433
        %460 = vmatprep.subr.bf16.mxu0 0
        %461 = vmatpush1.bf16.msra.mxu0 %v434
        %462 = vmatprep.subr.bf16.mxu0 0
        %463 = vmatpush1.bf16.msra.mxu0 %v435
        %464 = vmatprep.subr.bf16.mxu0 0
        %465 = vmatpush1.bf16.msra.mxu0 %v436
        %466 = vmatprep.subr.bf16.mxu0 0
        %467 = vmatpush1.bf16.msra.mxu0 %v437
        %468 = vmatprep.subr.bf16.mxu0 0
        %469 = vmatpush1.bf16.msra.mxu0 %v438
        %470 = vmatprep.subr.bf16.mxu0 0
        %471 = vmatpush1.bf16.msra.mxu0 0
        %472 = vmatprep.subr.bf16.mxu0 0
        %473 = vmatpush1.bf16.msra.mxu0 0
        %474 = vmatprep.subr.bf16.mxu0 0
        %475 = vmatpush1.bf16.msra.mxu0 0
        %476 = vmatprep.subr.bf16.mxu0 0
        %477 = vmatpush1.bf16.msra.mxu0 0
        %478 = vmatprep.subr.bf16.mxu0 0
        %479 = vmatpush1.bf16.msra.mxu0 0
        %480 = vmatprep.subr.bf16.mxu0 0
        %481 = vmatpush1.bf16.msra.mxu0 0
        %482 = vmatprep.subr.bf16.mxu0 0
        %483 = vmatpush1.bf16.msra.mxu0 0
        %484 = vmatprep.subr.bf16.mxu0 0
        %485 = vmatpush1.bf16.msra.mxu0 0
        %486 = vmatprep.subr.bf16.mxu0 0
        %487 = vmatpush1.bf16.msra.mxu0 0
        %488 = vmatprep.subr.bf16.mxu0 0
        %489 = vmatpush1.bf16.msra.mxu0 0
        %490 = vmatprep.mubr.bf16.mxu0 0
        %491 = vmatmul.mubr.bf16.gmra.mrb[0].mxu0 %v447
        %v492 = vpop.f32.mrb[0].mxu0
        %v493 = vadd.f32 %v407, %v492
        %v494 = vpop.f32.mrb[0].mxu0
        %v495 = vpop.f32.mrb[0].mxu0
        %v496 = vadd.f32 %v407, %v495
        %v497 = vpop.f32.mrb[0].mxu0
        %498 = vmatprep.mubr.bf16.mxu0 0
        %499 = vmatmul.mubr.bf16.gmra.mrb[0].mxu0 %v450
        %v500 = vpop.f32.mrb[0].mxu0
        %v501 = vadd.f32 %v407, %v500
        %v502 = vpop.f32.mrb[0].mxu0
        %v503 = vpop.f32.mrb[0].mxu0
        %v504 = vadd.f32 %v407, %v503
        %v505 = vpop.f32.mrb[0].mxu0
        %506 = vmatprep.mubr.bf16.mxu0 0
        %507 = vmatmul.mubr.bf16.gmra.mrb[0].mxu0 %v453
        %v508 = vpop.f32.mrb[0].mxu0
        %v509 = vadd.f32 %v407, %v508
        %v510 = vpop.f32.mrb[0].mxu0
        %v511 = vpop.f32.mrb[0].mxu0
        %v512 = vadd.f32 %v407, %v511
        %v513 = vpop.f32.mrb[0].mxu0
        %514 = vmatprep.mubr.bf16.mxu0 0
        %515 = vmatmul.mubr.bf16.gmra.mrb[0].mxu0 %v456
        %v516 = vpop.f32.mrb[0].mxu0
        %v517 = vadd.f32 %v407, %v516
        %v518 = vpop.f32.mrb[0].mxu0
        %v519 = vpop.f32.mrb[0].mxu0
        %v520 = vadd.f32 %v407, %v519
        %v521 = vpop.f32.mrb[0].mxu0
        %522 = vdwg.mxu0
        %v523 = vmax.f32 %v493, 0.0
        %v524 = vmax.f32 %v496, 0.0
        %v525 = vmax.f32 %v501, 0.0
        %v526 = vmax.f32 %v504, 0.0
        %v527 = vmax.f32 %v509, 0.0
        %v528 = vmax.f32 %v512, 0.0
        %v529 = vmax.f32 %v517, 0.0
        %v530 = vmax.f32 %v520, 0.0
        %v531 = vpack.c.bf16 %v524, %v523
        %v532 = vpack.c.bf16 %v526, %v525
        %v533 = vpack.c.bf16 %v528, %v527
        %v534 = vpack.c.bf16 %v530, %v529
        %v536 = vlaneseq
        %v537 = vshrl.u32 %v536, 7
        %v538 = vsub.s32 0, %v537
        %v539 = vrot.slane %v388, %v538
        %v549 = vunpack.c.l.b16 %v367
        %v550 = vunpack.c.l.b16 %v368
        %v551 = vunpack.c.l.b16 %v369
        %v552 = vunpack.c.l.b16 %v370
        %v553 = vunpack.c.l.b16 %v371
        %v554 = vunpack.c.l.b16 %v372
        %v555 = vunpack.c.l.b16 %v373
        %v556 = vunpack.c.l.b16 %v374
        %v557 = vpack.c.b16 %v550, %v549
        %v558 = vpack.c.b16 %v552, %v551
        %v559 = vpack.c.b16 %v554, %v553
        %v560 = vpack.c.b16 %v556, %v555
        %vm565 = vcmask 523264
        %v567 = vsel %vm565, %v531, 0
        %v570 = vsel %vm565, %v532, 0
        %v573 = vsel %vm565, %v533, 0
        %v576 = vsel %vm565, %v534, 0
        %578 = vmatprep.subr.bf16.mxu0 0
        %579 = vmatpush1.bf16.msra.mxu0 %v557
        %580 = vmatprep.subr.bf16.mxu0 0
        %581 = vmatpush1.bf16.msra.mxu0 %v558
        %582 = vmatprep.subr.bf16.mxu0 0
        %583 = vmatpush1.bf16.msra.mxu0 %v559
        %584 = vmatprep.subr.bf16.mxu0 0
        %585 = vmatpush1.bf16.msra.mxu0 %v560
        %586 = vmatprep.subr.bf16.mxu0 0
        %587 = vmatpush1.bf16.msra.mxu0 0
        %588 = vmatprep.subr.bf16.mxu0 0
        %589 = vmatpush1.bf16.msra.mxu0 0
        %590 = vmatprep.subr.bf16.mxu0 0
        %591 = vmatpush1.bf16.msra.mxu0 0
        %592 = vmatprep.subr.bf16.mxu0 0
        %593 = vmatpush1.bf16.msra.mxu0 0
        %594 = vmatprep.subr.bf16.mxu0 0
        %595 = vmatpush1.bf16.msra.mxu0 0
        %596 = vmatprep.subr.bf16.mxu0 0
        %597 = vmatpush1.bf16.msra.mxu0 0
        %598 = vmatprep.subr.bf16.mxu0 0
        %599 = vmatpush1.bf16.msra.mxu0 0
        %600 = vmatprep.subr.bf16.mxu0 0
        %601 = vmatpush1.bf16.msra.mxu0 0
        %602 = vmatprep.subr.bf16.mxu0 0
        %603 = vmatpush1.bf16.msra.mxu0 0
        %604 = vmatprep.subr.bf16.mxu0 0
        %605 = vmatpush1.bf16.msra.mxu0 0
        %606 = vmatprep.subr.bf16.mxu0 0
        %607 = vmatpush1.bf16.msra.mxu0 0
        %608 = vmatprep.subr.bf16.mxu0 0
        %609 = vmatpush1.bf16.msra.mxu0 0
        %610 = vmatprep.mubr.bf16.mxu0 0
        %611 = vmatmul.mubr.bf16.gmra.mrb[0].mxu0 %v567
        %v612 = vpop.f32.mrb[0].mxu0
        %v613 = vadd.f32 %v539, %v612
        %v614 = vpop.f32.mrb[0].mxu0
        %v615 = vpop.f32.mrb[0].mxu0
        %v616 = vadd.f32 %v539, %v615
        %v617 = vpop.f32.mrb[0].mxu0
        %618 = vmatprep.mubr.bf16.mxu0 0
        %619 = vmatmul.mubr.bf16.gmra.mrb[0].mxu0 %v570
        %v620 = vpop.f32.mrb[0].mxu0
        %v621 = vadd.f32 %v539, %v620
        %v622 = vpop.f32.mrb[0].mxu0
        %v623 = vpop.f32.mrb[0].mxu0
        %v624 = vadd.f32 %v539, %v623
        %v625 = vpop.f32.mrb[0].mxu0
        %626 = vmatprep.mubr.bf16.mxu0 0
        %627 = vmatmul.mubr.bf16.gmra.mrb[0].mxu0 %v573
        %v628 = vpop.f32.mrb[0].mxu0
        %v629 = vadd.f32 %v539, %v628
        %v630 = vpop.f32.mrb[0].mxu0
        %v631 = vpop.f32.mrb[0].mxu0
        %v632 = vadd.f32 %v539, %v631
        %v633 = vpop.f32.mrb[0].mxu0
        %634 = vmatprep.mubr.bf16.mxu0 0
        %635 = vmatmul.mubr.bf16.gmra.mrb[0].mxu0 %v576
        %v636 = vpop.f32.mrb[0].mxu0
        %v637 = vadd.f32 %v539, %v636
        %v638 = vpop.f32.mrb[0].mxu0
        %v639 = vpop.f32.mrb[0].mxu0
        %v640 = vadd.f32 %v539, %v639
        %v641 = vpop.f32.mrb[0].mxu0
        %642 = vdwg.mxu0
        %v643 = vmax.f32 %v613, 0.0
        %v644 = vmax.f32 %v616, 0.0
        %v645 = vmax.f32 %v621, 0.0
        %v646 = vmax.f32 %v624, 0.0
        %v647 = vmax.f32 %v629, 0.0
        %v648 = vmax.f32 %v632, 0.0
        %v649 = vmax.f32 %v637, 0.0
        %v650 = vmax.f32 %v640, 0.0
        %v651 = vpack.c.bf16 %v644, %v643
        %v652 = vpack.c.bf16 %v646, %v645
        %v653 = vpack.c.bf16 %v648, %v647
        %v654 = vpack.c.bf16 %v650, %v649
        %v656 = vlaneseq
        %v657 = vshrl.u32 %v656, 7
        %v658 = vsub.s32 0, %v657
        %v659 = vrot.slane %v389, %v658
        %v665 = vunpack.c.l.b16 %v375
        %v666 = vunpack.c.l.b16 %v376
        %v667 = vunpack.c.l.b16 %v377
        %v668 = vunpack.c.l.b16 %v378
        %v669 = vpack.c.b16 %v666, %v665
        %v670 = vpack.c.b16 %v668, %v667
        %vm673 = vcmask 261120
        %v675 = vsel %vm673, %v651, 0
        %v678 = vsel %vm673, %v652, 0
        %v681 = vsel %vm673, %v653, 0
        %v684 = vsel %vm673, %v654, 0
        %686 = vmatprep.subr.bf16.mxu0 0
        %687 = vmatpush1.bf16.msra.mxu0 %v669
        %688 = vmatprep.subr.bf16.mxu0 0
        %689 = vmatpush1.bf16.msra.mxu0 %v670
        %690 = vmatprep.subr.bf16.mxu0 0
        %691 = vmatpush1.bf16.msra.mxu0 0
        %692 = vmatprep.subr.bf16.mxu0 0
        %693 = vmatpush1.bf16.msra.mxu0 0
        %694 = vmatprep.subr.bf16.mxu0 0
        %695 = vmatpush1.bf16.msra.mxu0 0
        %696 = vmatprep.subr.bf16.mxu0 0
        %697 = vmatpush1.bf16.msra.mxu0 0
        %698 = vmatprep.subr.bf16.mxu0 0
        %699 = vmatpush1.bf16.msra.mxu0 0
        %700 = vmatprep.subr.bf16.mxu0 0
        %701 = vmatpush1.bf16.msra.mxu0 0
        %702 = vmatprep.subr.bf16.mxu0 0
        %703 = vmatpush1.bf16.msra.mxu0 0
        %704 = vmatprep.subr.bf16.mxu0 0
        %705 = vmatpush1.bf16.msra.mxu0 0
        %706 = vmatprep.subr.bf16.mxu0 0
        %707 = vmatpush1.bf16.msra.mxu0 0
        %708 = vmatprep.subr.bf16.mxu0 0
        %709 = vmatpush1.bf16.msra.mxu0 0
        %710 = vmatprep.subr.bf16.mxu0 0
        %711 = vmatpush1.bf16.msra.mxu0 0
        %712 = vmatprep.subr.bf16.mxu0 0
        %713 = vmatpush1.bf16.msra.mxu0 0
        %714 = vmatprep.subr.bf16.mxu0 0
        %715 = vmatpush1.bf16.msra.mxu0 0
        %716 = vmatprep.subr.bf16.mxu0 0
        %717 = vmatpush1.bf16.msra.mxu0 0
        %718 = vmatprep.mubr.bf16.mxu0 0
        %719 = vmatmul.mubr.bf16.gmra.mrb[0].mxu0 %v675
        %v720 = vpop.f32.mrb[0].mxu0
        %v721 = vadd.f32 %v659, %v720
        %v722 = vpop.f32.mrb[0].mxu0
        %v723 = vpop.f32.mrb[0].mxu0
        %v724 = vadd.f32 %v659, %v723
        %v725 = vpop.f32.mrb[0].mxu0
        %726 = vmatprep.mubr.bf16.mxu0 0
        %727 = vmatmul.mubr.bf16.gmra.mrb[0].mxu0 %v678
        %v728 = vpop.f32.mrb[0].mxu0
        %v729 = vadd.f32 %v659, %v728
        %v730 = vpop.f32.mrb[0].mxu0
        %v731 = vpop.f32.mrb[0].mxu0
        %v732 = vadd.f32 %v659, %v731
        %v733 = vpop.f32.mrb[0].mxu0
        %734 = vmatprep.mubr.bf16.mxu0 0
        %735 = vmatmul.mubr.bf16.gmra.mrb[0].mxu0 %v681
        %v736 = vpop.f32.mrb[0].mxu0
        %v737 = vadd.f32 %v659, %v736
        %v738 = vpop.f32.mrb[0].mxu0
        %v739 = vpop.f32.mrb[0].mxu0
        %v740 = vadd.f32 %v659, %v739
        %v741 = vpop.f32.mrb[0].mxu0
        %742 = vmatprep.mubr.bf16.mxu0 0
        %743 = vmatmul.mubr.bf16.gmra.mrb[0].mxu0 %v684
        %v744 = vpop.f32.mrb[0].mxu0
        %v745 = vadd.f32 %v659, %v744
        %v746 = vpop.f32.mrb[0].mxu0
        %v747 = vpop.f32.mrb[0].mxu0
        %v748 = vadd.f32 %v659, %v747
        %v749 = vpop.f32.mrb[0].mxu0
        %750 = vdwg.mxu0
        %v751 = vmax.f32 %v721, 0.0
        %v752 = vmax.f32 %v724, 0.0
        %v753 = vmax.f32 %v729, 0.0
        %v754 = vmax.f32 %v732, 0.0
        %v755 = vmax.f32 %v737, 0.0
        %v756 = vmax.f32 %v740, 0.0
        %v757 = vmax.f32 %v745, 0.0
        %v758 = vmax.f32 %v748, 0.0
        %v759 = vpack.c.bf16 %v752, %v751
        %v760 = vpack.c.bf16 %v754, %v753
        %v761 = vpack.c.bf16 %v756, %v755
        %v762 = vpack.c.bf16 %v758, %v757
        %v764 = vlaneseq
        %v765 = vshrl.u32 %v764, 7
        %v766 = vsub.s32 0, %v765
        %v767 = vrot.slane %v390, %v766
        %v777 = vunpack.c.l.b16 %v379
        %v778 = vunpack.c.l.b16 %v380
        %v779 = vunpack.c.l.b16 %v381
        %v780 = vunpack.c.l.b16 %v382
        %v781 = vunpack.c.l.b16 %v383
        %v782 = vunpack.c.l.b16 %v384
        %v783 = vunpack.c.l.b16 %v385
        %v784 = vunpack.c.l.b16 %v386
        %v785 = vpack.c.b16 %v778, %v777
        %v786 = vpack.c.b16 %v780, %v779
        %v787 = vpack.c.b16 %v782, %v781
        %v788 = vpack.c.b16 %v784, %v783
        %v794 = vsel %vm565, %v759, 0
        %v797 = vsel %vm565, %v760, 0
        %v800 = vsel %vm565, %v761, 0
        %v803 = vsel %vm565, %v762, 0
        %805 = vmatprep.subr.bf16.mxu0 0
        %806 = vmatpush1.bf16.msra.mxu0 %v785
        %807 = vmatprep.subr.bf16.mxu0 0
        %808 = vmatpush1.bf16.msra.mxu0 %v786
        %809 = vmatprep.subr.bf16.mxu0 0
        %810 = vmatpush1.bf16.msra.mxu0 %v787
        %811 = vmatprep.subr.bf16.mxu0 0
        %812 = vmatpush1.bf16.msra.mxu0 %v788
        %813 = vmatprep.subr.bf16.mxu0 0
        %814 = vmatpush1.bf16.msra.mxu0 0
        %815 = vmatprep.subr.bf16.mxu0 0
        %816 = vmatpush1.bf16.msra.mxu0 0
        %817 = vmatprep.subr.bf16.mxu0 0
        %818 = vmatpush1.bf16.msra.mxu0 0
        %819 = vmatprep.subr.bf16.mxu0 0
        %820 = vmatpush1.bf16.msra.mxu0 0
        %821 = vmatprep.subr.bf16.mxu0 0
        %822 = vmatpush1.bf16.msra.mxu0 0
        %823 = vmatprep.subr.bf16.mxu0 0
        %824 = vmatpush1.bf16.msra.mxu0 0
        %825 = vmatprep.subr.bf16.mxu0 0
        %826 = vmatpush1.bf16.msra.mxu0 0
        %827 = vmatprep.subr.bf16.mxu0 0
        %828 = vmatpush1.bf16.msra.mxu0 0
        %829 = vmatprep.subr.bf16.mxu0 0
        %830 = vmatpush1.bf16.msra.mxu0 0
        %831 = vmatprep.subr.bf16.mxu0 0
        %832 = vmatpush1.bf16.msra.mxu0 0
        %833 = vmatprep.subr.bf16.mxu0 0
        %834 = vmatpush1.bf16.msra.mxu0 0
        %835 = vmatprep.subr.bf16.mxu0 0
        %836 = vmatpush1.bf16.msra.mxu0 0
        %837 = vmatprep.mubr.bf16.mxu0 0
        %838 = vmatmul.mubr.bf16.gmra.mrb[0].mxu0 %v794
        %v839 = vpop.f32.mrb[0].mxu0
        %v840 = vadd.f32 %v767, %v839
        %v841 = vpop.f32.mrb[0].mxu0
        %v842 = vpop.f32.mrb[0].mxu0
        %v843 = vadd.f32 %v767, %v842
        %v844 = vpop.f32.mrb[0].mxu0
        %845 = vmatprep.mubr.bf16.mxu0 0
        %846 = vmatmul.mubr.bf16.gmra.mrb[0].mxu0 %v797
        %v847 = vpop.f32.mrb[0].mxu0
        %v848 = vadd.f32 %v767, %v847
        %v849 = vpop.f32.mrb[0].mxu0
        %v850 = vpop.f32.mrb[0].mxu0
        %v851 = vadd.f32 %v767, %v850
        %v852 = vpop.f32.mrb[0].mxu0
        %853 = vmatprep.mubr.bf16.mxu0 0
        %854 = vmatmul.mubr.bf16.gmra.mrb[0].mxu0 %v800
        %v855 = vpop.f32.mrb[0].mxu0
        %v856 = vadd.f32 %v767, %v855
        %v857 = vpop.f32.mrb[0].mxu0
        %v858 = vpop.f32.mrb[0].mxu0
        %v859 = vadd.f32 %v767, %v858
        %v860 = vpop.f32.mrb[0].mxu0
        %861 = vmatprep.mubr.bf16.mxu0 0
        %862 = vmatmul.mubr.bf16.gmra.mrb[0].mxu0 %v803
        %v863 = vpop.f32.mrb[0].mxu0
        %v864 = vadd.f32 %v767, %v863
        %v865 = vpop.f32.mrb[0].mxu0
        %v866 = vpop.f32.mrb[0].mxu0
        %v867 = vadd.f32 %v767, %v866
        %v868 = vpop.f32.mrb[0].mxu0
        %869 = vdwg.mxu0
        %870 = vst.msk [vmem:[%s334] sm:$0xff] %vm445, %v840
        %871 = vst.msk [vmem:[%s334 + $0x8] sm:$0xff] %vm445, %v843
        %872 = vst.msk [vmem:[%s334 + $0x10] sm:$0xff] %vm445, %v848
        %873 = vst.msk [vmem:[%s334 + $0x18] sm:$0xff] %vm445, %v851
        %874 = vst.msk [vmem:[%s334 + $0x20] sm:$0xff] %vm445, %v856
        %875 = vst.msk [vmem:[%s334 + $0x28] sm:$0xff] %vm445, %v859
        %876 = vst.msk [vmem:[%s334 + $0x30] sm:$0xff] %vm445, %v864
        %877 = vst.msk [vmem:[%s334 + $0x38] sm:$0xff] %vm445, %v867
        %v878 = vld [vmem:[%s343 + $0x40] sm:$0xff]
        %v879 = vld [vmem:[%s343 + $0x48] sm:$0xff]
        %v880 = vld [vmem:[%s343 + $0x50] sm:$0xff]
        %v881 = vld [vmem:[%s343 + $0x58] sm:$0xff]
        %v882 = vld [vmem:[%s343 + $0x60] sm:$0xff]
        %v883 = vld [vmem:[%s343 + $0x68] sm:$0xff]
        %v884 = vld [vmem:[%s343 + $0x70] sm:$0xff]
        %v885 = vld [vmem:[%s343 + $0x78] sm:$0xff]
        %v886 = vpack.c.bf16 %v879, %v878
        %v887 = vpack.c.bf16 %v881, %v880
        %v888 = vpack.c.bf16 %v883, %v882
        %v889 = vpack.c.bf16 %v885, %v884
        %v891 = vsel %vm445, %v886, 0
        %v894 = vsel %vm445, %v887, 0
        %v897 = vsel %vm445, %v888, 0
        %v900 = vsel %vm445, %v889, 0
        %902 = vmatprep.subr.bf16.mxu0 0
        %903 = vmatpush1.bf16.msra.mxu0 %v433
        %904 = vmatprep.subr.bf16.mxu0 0
        %905 = vmatpush1.bf16.msra.mxu0 %v434
        %906 = vmatprep.subr.bf16.mxu0 0
        %907 = vmatpush1.bf16.msra.mxu0 %v435
        %908 = vmatprep.subr.bf16.mxu0 0
        %909 = vmatpush1.bf16.msra.mxu0 %v436
        %910 = vmatprep.subr.bf16.mxu0 0
        %911 = vmatpush1.bf16.msra.mxu0 %v437
        %912 = vmatprep.subr.bf16.mxu0 0
        %913 = vmatpush1.bf16.msra.mxu0 %v438
        %914 = vmatprep.subr.bf16.mxu0 0
        %915 = vmatpush1.bf16.msra.mxu0 0
        %916 = vmatprep.subr.bf16.mxu0 0
        %917 = vmatpush1.bf16.msra.mxu0 0
        %918 = vmatprep.subr.bf16.mxu0 0
        %919 = vmatpush1.bf16.msra.mxu0 0
        %920 = vmatprep.subr.bf16.mxu0 0
        %921 = vmatpush1.bf16.msra.mxu0 0
        %922 = vmatprep.subr.bf16.mxu0 0
        %923 = vmatpush1.bf16.msra.mxu0 0
        %924 = vmatprep.subr.bf16.mxu0 0
        %925 = vmatpush1.bf16.msra.mxu0 0
        %926 = vmatprep.subr.bf16.mxu0 0
        %927 = vmatpush1.bf16.msra.mxu0 0
        %928 = vmatprep.subr.bf16.mxu0 0
        %929 = vmatpush1.bf16.msra.mxu0 0
        %930 = vmatprep.subr.bf16.mxu0 0
        %931 = vmatpush1.bf16.msra.mxu0 0
        %932 = vmatprep.subr.bf16.mxu0 0
        %933 = vmatpush1.bf16.msra.mxu0 0
        %934 = vmatprep.mubr.bf16.mxu0 0
        %935 = vmatmul.mubr.bf16.gmra.mrb[0].mxu0 %v891
        %v936 = vpop.f32.mrb[0].mxu0
        %v937 = vadd.f32 %v407, %v936
        %v938 = vpop.f32.mrb[0].mxu0
        %v939 = vpop.f32.mrb[0].mxu0
        %v940 = vadd.f32 %v407, %v939
        %v941 = vpop.f32.mrb[0].mxu0
        %942 = vmatprep.mubr.bf16.mxu0 0
        %943 = vmatmul.mubr.bf16.gmra.mrb[0].mxu0 %v894
        %v944 = vpop.f32.mrb[0].mxu0
        %v945 = vadd.f32 %v407, %v944
        %v946 = vpop.f32.mrb[0].mxu0
        %v947 = vpop.f32.mrb[0].mxu0
        %v948 = vadd.f32 %v407, %v947
        %v949 = vpop.f32.mrb[0].mxu0
        %950 = vmatprep.mubr.bf16.mxu0 0
        %951 = vmatmul.mubr.bf16.gmra.mrb[0].mxu0 %v897
        %v952 = vpop.f32.mrb[0].mxu0
        %v953 = vadd.f32 %v407, %v952
        %v954 = vpop.f32.mrb[0].mxu0
        %v955 = vpop.f32.mrb[0].mxu0
        %v956 = vadd.f32 %v407, %v955
        %v957 = vpop.f32.mrb[0].mxu0
        %958 = vmatprep.mubr.bf16.mxu0 0
        %959 = vmatmul.mubr.bf16.gmra.mrb[0].mxu0 %v900
        %v960 = vpop.f32.mrb[0].mxu0
        %v961 = vadd.f32 %v407, %v960
        %v962 = vpop.f32.mrb[0].mxu0
        %v963 = vpop.f32.mrb[0].mxu0
        %v964 = vadd.f32 %v407, %v963
        %v965 = vpop.f32.mrb[0].mxu0
        %966 = vdwg.mxu0
        %v967 = vmax.f32 %v937, 0.0
        %v968 = vmax.f32 %v940, 0.0
        %v969 = vmax.f32 %v945, 0.0
        %v970 = vmax.f32 %v948, 0.0
        %v971 = vmax.f32 %v953, 0.0
        %v972 = vmax.f32 %v956, 0.0
        %v973 = vmax.f32 %v961, 0.0
        %v974 = vmax.f32 %v964, 0.0
        %v975 = vpack.c.bf16 %v968, %v967
        %v976 = vpack.c.bf16 %v970, %v969
        %v977 = vpack.c.bf16 %v972, %v971
        %v978 = vpack.c.bf16 %v974, %v973
        %v980 = vsel %vm565, %v975, 0
        %v983 = vsel %vm565, %v976, 0
        %v986 = vsel %vm565, %v977, 0
        %v989 = vsel %vm565, %v978, 0
        %991 = vmatprep.subr.bf16.mxu0 0
        %992 = vmatpush1.bf16.msra.mxu0 %v557
        %993 = vmatprep.subr.bf16.mxu0 0
        %994 = vmatpush1.bf16.msra.mxu0 %v558
        %995 = vmatprep.subr.bf16.mxu0 0
        %996 = vmatpush1.bf16.msra.mxu0 %v559
        %997 = vmatprep.subr.bf16.mxu0 0
        %998 = vmatpush1.bf16.msra.mxu0 %v560
        %999 = vmatprep.subr.bf16.mxu0 0
        %1000 = vmatpush1.bf16.msra.mxu0 0
        %1001 = vmatprep.subr.bf16.mxu0 0
        %1002 = vmatpush1.bf16.msra.mxu0 0
        %1003 = vmatprep.subr.bf16.mxu0 0
        %1004 = vmatpush1.bf16.msra.mxu0 0
        %1005 = vmatprep.subr.bf16.mxu0 0
        %1006 = vmatpush1.bf16.msra.mxu0 0
        %1007 = vmatprep.subr.bf16.mxu0 0
        %1008 = vmatpush1.bf16.msra.mxu0 0
        %1009 = vmatprep.subr.bf16.mxu0 0
        %1010 = vmatpush1.bf16.msra.mxu0 0
        %1011 = vmatprep.subr.bf16.mxu0 0
        %1012 = vmatpush1.bf16.msra.mxu0 0
        %1013 = vmatprep.subr.bf16.mxu0 0
        %1014 = vmatpush1.bf16.msra.mxu0 0
        %1015 = vmatprep.subr.bf16.mxu0 0
        %1016 = vmatpush1.bf16.msra.mxu0 0
        %1017 = vmatprep.subr.bf16.mxu0 0
        %1018 = vmatpush1.bf16.msra.mxu0 0
        %1019 = vmatprep.subr.bf16.mxu0 0
        %1020 = vmatpush1.bf16.msra.mxu0 0
        %1021 = vmatprep.subr.bf16.mxu0 0
        %1022 = vmatpush1.bf16.msra.mxu0 0
        %1023 = vmatprep.mubr.bf16.mxu0 0
        %1024 = vmatmul.mubr.bf16.gmra.mrb[0].mxu0 %v980
        %v1025 = vpop.f32.mrb[0].mxu0
        %v1026 = vadd.f32 %v539, %v1025
        %v1027 = vpop.f32.mrb[0].mxu0
        %v1028 = vpop.f32.mrb[0].mxu0
        %v1029 = vadd.f32 %v539, %v1028
        %v1030 = vpop.f32.mrb[0].mxu0
        %1031 = vmatprep.mubr.bf16.mxu0 0
        %1032 = vmatmul.mubr.bf16.gmra.mrb[0].mxu0 %v983
        %v1033 = vpop.f32.mrb[0].mxu0
        %v1034 = vadd.f32 %v539, %v1033
        %v1035 = vpop.f32.mrb[0].mxu0
        %v1036 = vpop.f32.mrb[0].mxu0
        %v1037 = vadd.f32 %v539, %v1036
        %v1038 = vpop.f32.mrb[0].mxu0
        %1039 = vmatprep.mubr.bf16.mxu0 0
        %1040 = vmatmul.mubr.bf16.gmra.mrb[0].mxu0 %v986
        %v1041 = vpop.f32.mrb[0].mxu0
        %v1042 = vadd.f32 %v539, %v1041
        %v1043 = vpop.f32.mrb[0].mxu0
        %v1044 = vpop.f32.mrb[0].mxu0
        %v1045 = vadd.f32 %v539, %v1044
        %v1046 = vpop.f32.mrb[0].mxu0
        %1047 = vmatprep.mubr.bf16.mxu0 0
        %1048 = vmatmul.mubr.bf16.gmra.mrb[0].mxu0 %v989
        %v1049 = vpop.f32.mrb[0].mxu0
        %v1050 = vadd.f32 %v539, %v1049
        %v1051 = vpop.f32.mrb[0].mxu0
        %v1052 = vpop.f32.mrb[0].mxu0
        %v1053 = vadd.f32 %v539, %v1052
        %v1054 = vpop.f32.mrb[0].mxu0
        %1055 = vdwg.mxu0
        %v1056 = vmax.f32 %v1026, 0.0
        %v1057 = vmax.f32 %v1029, 0.0
        %v1058 = vmax.f32 %v1034, 0.0
        %v1059 = vmax.f32 %v1037, 0.0
        %v1060 = vmax.f32 %v1042, 0.0
        %v1061 = vmax.f32 %v1045, 0.0
        %v1062 = vmax.f32 %v1050, 0.0
        %v1063 = vmax.f32 %v1053, 0.0
        %v1064 = vpack.c.bf16 %v1057, %v1056
        %v1065 = vpack.c.bf16 %v1059, %v1058
        %v1066 = vpack.c.bf16 %v1061, %v1060
        %v1067 = vpack.c.bf16 %v1063, %v1062
        %v1069 = vsel %vm673, %v1064, 0
        %v1072 = vsel %vm673, %v1065, 0
        %v1075 = vsel %vm673, %v1066, 0
        %v1078 = vsel %vm673, %v1067, 0
        %1080 = vmatprep.subr.bf16.mxu0 0
        %1081 = vmatpush1.bf16.msra.mxu0 %v669
        %1082 = vmatprep.subr.bf16.mxu0 0
        %1083 = vmatpush1.bf16.msra.mxu0 %v670
        %1084 = vmatprep.subr.bf16.mxu0 0
        %1085 = vmatpush1.bf16.msra.mxu0 0
        %1086 = vmatprep.subr.bf16.mxu0 0
        %1087 = vmatpush1.bf16.msra.mxu0 0
        %1088 = vmatprep.subr.bf16.mxu0 0
        %1089 = vmatpush1.bf16.msra.mxu0 0
        %1090 = vmatprep.subr.bf16.mxu0 0
        %1091 = vmatpush1.bf16.msra.mxu0 0
        %1092 = vmatprep.subr.bf16.mxu0 0
        %1093 = vmatpush1.bf16.msra.mxu0 0
        %1094 = vmatprep.subr.bf16.mxu0 0
        %1095 = vmatpush1.bf16.msra.mxu0 0
        %1096 = vmatprep.subr.bf16.mxu0 0
        %1097 = vmatpush1.bf16.msra.mxu0 0
        %1098 = vmatprep.subr.bf16.mxu0 0
        %1099 = vmatpush1.bf16.msra.mxu0 0
        %1100 = vmatprep.subr.bf16.mxu0 0
        %1101 = vmatpush1.bf16.msra.mxu0 0
        %1102 = vmatprep.subr.bf16.mxu0 0
        %1103 = vmatpush1.bf16.msra.mxu0 0
        %1104 = vmatprep.subr.bf16.mxu0 0
        %1105 = vmatpush1.bf16.msra.mxu0 0
        %1106 = vmatprep.subr.bf16.mxu0 0
        %1107 = vmatpush1.bf16.msra.mxu0 0
        %1108 = vmatprep.subr.bf16.mxu0 0
        %1109 = vmatpush1.bf16.msra.mxu0 0
        %1110 = vmatprep.subr.bf16.mxu0 0
        %1111 = vmatpush1.bf16.msra.mxu0 0
        %1112 = vmatprep.mubr.bf16.mxu0 0
        %1113 = vmatmul.mubr.bf16.gmra.mrb[0].mxu0 %v1069
        %v1114 = vpop.f32.mrb[0].mxu0
        %v1115 = vadd.f32 %v659, %v1114
        %v1116 = vpop.f32.mrb[0].mxu0
        %v1117 = vpop.f32.mrb[0].mxu0
        %v1118 = vadd.f32 %v659, %v1117
        %v1119 = vpop.f32.mrb[0].mxu0
        %1120 = vmatprep.mubr.bf16.mxu0 0
        %1121 = vmatmul.mubr.bf16.gmra.mrb[0].mxu0 %v1072
        %v1122 = vpop.f32.mrb[0].mxu0
        %v1123 = vadd.f32 %v659, %v1122
        %v1124 = vpop.f32.mrb[0].mxu0
        %v1125 = vpop.f32.mrb[0].mxu0
        %v1126 = vadd.f32 %v659, %v1125
        %v1127 = vpop.f32.mrb[0].mxu0
        %1128 = vmatprep.mubr.bf16.mxu0 0
        %1129 = vmatmul.mubr.bf16.gmra.mrb[0].mxu0 %v1075
        %v1130 = vpop.f32.mrb[0].mxu0
        %v1131 = vadd.f32 %v659, %v1130
        %v1132 = vpop.f32.mrb[0].mxu0
        %v1133 = vpop.f32.mrb[0].mxu0
        %v1134 = vadd.f32 %v659, %v1133
        %v1135 = vpop.f32.mrb[0].mxu0
        %1136 = vmatprep.mubr.bf16.mxu0 0
        %1137 = vmatmul.mubr.bf16.gmra.mrb[0].mxu0 %v1078
        %v1138 = vpop.f32.mrb[0].mxu0
        %v1139 = vadd.f32 %v659, %v1138
        %v1140 = vpop.f32.mrb[0].mxu0
        %v1141 = vpop.f32.mrb[0].mxu0
        %v1142 = vadd.f32 %v659, %v1141
        %v1143 = vpop.f32.mrb[0].mxu0
        %1144 = vdwg.mxu0
        %v1145 = vmax.f32 %v1115, 0.0
        %v1146 = vmax.f32 %v1118, 0.0
        %v1147 = vmax.f32 %v1123, 0.0
        %v1148 = vmax.f32 %v1126, 0.0
        %v1149 = vmax.f32 %v1131, 0.0
        %v1150 = vmax.f32 %v1134, 0.0
        %v1151 = vmax.f32 %v1139, 0.0
        %v1152 = vmax.f32 %v1142, 0.0
        %v1153 = vpack.c.bf16 %v1146, %v1145
        %v1154 = vpack.c.bf16 %v1148, %v1147
        %v1155 = vpack.c.bf16 %v1150, %v1149
        %v1156 = vpack.c.bf16 %v1152, %v1151
        %v1158 = vsel %vm565, %v1153, 0
        %v1161 = vsel %vm565, %v1154, 0
        %v1164 = vsel %vm565, %v1155, 0
        %v1167 = vsel %vm565, %v1156, 0
        %1169 = vmatprep.subr.bf16.mxu0 0
        %1170 = vmatpush1.bf16.msra.mxu0 %v785
        %1171 = vmatprep.subr.bf16.mxu0 0
        %1172 = vmatpush1.bf16.msra.mxu0 %v786
        %1173 = vmatprep.subr.bf16.mxu0 0
        %1174 = vmatpush1.bf16.msra.mxu0 %v787
        %1175 = vmatprep.subr.bf16.mxu0 0
        %1176 = vmatpush1.bf16.msra.mxu0 %v788
        %1177 = vmatprep.subr.bf16.mxu0 0
        %1178 = vmatpush1.bf16.msra.mxu0 0
        %1179 = vmatprep.subr.bf16.mxu0 0
        %1180 = vmatpush1.bf16.msra.mxu0 0
        %1181 = vmatprep.subr.bf16.mxu0 0
        %1182 = vmatpush1.bf16.msra.mxu0 0
        %1183 = vmatprep.subr.bf16.mxu0 0
        %1184 = vmatpush1.bf16.msra.mxu0 0
        %1185 = vmatprep.subr.bf16.mxu0 0
        %1186 = vmatpush1.bf16.msra.mxu0 0
        %1187 = vmatprep.subr.bf16.mxu0 0
        %1188 = vmatpush1.bf16.msra.mxu0 0
        %1189 = vmatprep.subr.bf16.mxu0 0
        %1190 = vmatpush1.bf16.msra.mxu0 0
        %1191 = vmatprep.subr.bf16.mxu0 0
        %1192 = vmatpush1.bf16.msra.mxu0 0
        %1193 = vmatprep.subr.bf16.mxu0 0
        %1194 = vmatpush1.bf16.msra.mxu0 0
        %1195 = vmatprep.subr.bf16.mxu0 0
        %1196 = vmatpush1.bf16.msra.mxu0 0
        %1197 = vmatprep.subr.bf16.mxu0 0
        %1198 = vmatpush1.bf16.msra.mxu0 0
        %1199 = vmatprep.subr.bf16.mxu0 0
        %1200 = vmatpush1.bf16.msra.mxu0 0
        %1201 = vmatprep.mubr.bf16.mxu0 0
        %1202 = vmatmul.mubr.bf16.gmra.mrb[0].mxu0 %v1158
        %v1203 = vpop.f32.mrb[0].mxu0
        %v1204 = vadd.f32 %v767, %v1203
        %v1205 = vpop.f32.mrb[0].mxu0
        %v1206 = vpop.f32.mrb[0].mxu0
        %v1207 = vadd.f32 %v767, %v1206
        %v1208 = vpop.f32.mrb[0].mxu0
        %1209 = vmatprep.mubr.bf16.mxu0 0
        %1210 = vmatmul.mubr.bf16.gmra.mrb[0].mxu0 %v1161
        %v1211 = vpop.f32.mrb[0].mxu0
        %v1212 = vadd.f32 %v767, %v1211
        %v1213 = vpop.f32.mrb[0].mxu0
        %v1214 = vpop.f32.mrb[0].mxu0
        %v1215 = vadd.f32 %v767, %v1214
        %v1216 = vpop.f32.mrb[0].mxu0
        %1217 = vmatprep.mubr.bf16.mxu0 0
        %1218 = vmatmul.mubr.bf16.gmra.mrb[0].mxu0 %v1164
        %v1219 = vpop.f32.mrb[0].mxu0
        %v1220 = vadd.f32 %v767, %v1219
        %v1221 = vpop.f32.mrb[0].mxu0
        %v1222 = vpop.f32.mrb[0].mxu0
        %v1223 = vadd.f32 %v767, %v1222
        %v1224 = vpop.f32.mrb[0].mxu0
        %1225 = vmatprep.mubr.bf16.mxu0 0
        %1226 = vmatmul.mubr.bf16.gmra.mrb[0].mxu0 %v1167
        %v1227 = vpop.f32.mrb[0].mxu0
        %v1228 = vadd.f32 %v767, %v1227
        %v1229 = vpop.f32.mrb[0].mxu0
        %v1230 = vpop.f32.mrb[0].mxu0
        %v1231 = vadd.f32 %v767, %v1230
        %v1232 = vpop.f32.mrb[0].mxu0
        %1233 = vdwg.mxu0
        %1234 = vst.msk [vmem:[%s334 + $0x40] sm:$0xff] %vm445, %v1204
        %1235 = vst.msk [vmem:[%s334 + $0x48] sm:$0xff] %vm445, %v1207
        %1236 = vst.msk [vmem:[%s334 + $0x50] sm:$0xff] %vm445, %v1212
        %1237 = vst.msk [vmem:[%s334 + $0x58] sm:$0xff] %vm445, %v1215
        %1238 = vst.msk [vmem:[%s334 + $0x60] sm:$0xff] %vm445, %v1220
        %1239 = vst.msk [vmem:[%s334 + $0x68] sm:$0xff] %vm445, %v1223
        %1240 = vst.msk [vmem:[%s334 + $0x70] sm:$0xff] %vm445, %v1228
        %1241 = vst.msk [vmem:[%s334 + $0x78] sm:$0xff] %vm445, %v1231
        %s1242 = sand.u32 %s222, 1
        %s1243 = sand.u32 %s222, 1
        %s1244 = smul.addr %s1243, 128
        %s1245 = scalar_lea.vmem [#allocation2], %s1244
        // Predicated region
        $region57: #{autoencoder_forward.1} parent=55 // pred_check
          %p1246 = pneg %p232
        $region58: #{autoencoder_forward.1} parent=55 // pred_check_branch
          %1248 = sbr.rel (%p1246) target = $region60
        $region59: #{autoencoder_forward.1} parent=55 // pred_region
          %s1249 = smul.u32 16, %s20
          %s1250 = ssub.s32 25, %s1249
          %p1251 = scmp.lt.s32.totalorder %s1250, 16
          %s1252 = scalar_select %p1251, %s1250, 16
          %s1253 = smul.u32 128, %s1252
          %p1254 = scmp.ne.s32.totalorder 0, %s1253
          %s1255 = smul.addr %s1249, 8
          %s1256 = scalar_lea.vmem %s9, %s1255
          // Predicated region
          $region61: #{autoencoder_forward.1} parent=59 // pred_check
            %p1257 = pneg %p1254
          $region62: #{autoencoder_forward.1} parent=59 // pred_check_branch
            %1259 = sbr.rel (%p1257) target = $region64
          $region63: #{autoencoder_forward.1} parent=59 // pred_region
            // Predicated region
            $region65: #{autoencoder_forward.1} parent=63 // pred_check
              _
            $region66: #{autoencoder_forward.1} parent=63 // pred_check_branch
              %1261 = sbr.rel (0) target = $region68
            $region67: #{autoencoder_forward.1} parent=63 // pred_region
              // Predicated region
              $region87: #{autoencoder_forward.1} parent=67 // pred_check
                _
              $region88: #{autoencoder_forward.1} parent=67 // pred_check_branch
                %1340 = sbr.rel (0) target = $region90
              $region89: #{autoencoder_forward.1} parent=67 // pred_region
                %s1341 = sshrl.u32 %s1252, 4
                // While loop
                $region91: #{autoencoder_forward.1} parent=89 // loop_pre_header
                  _
                $region92: #{autoencoder_forward.1} parent=89 // loop_header
                  %s1343 = sphi 0, %s1345
                  %p1344 = scmp.ge.s32.totalorder %s1343, %s1341
                  %s1348 = sphi 0, %s1385
                  %s1349 = sphi %s1245, %s1388
                  %s1350 = sphi %s1256, %s1389
                $region93: #{autoencoder_forward.1} parent=89 // loop_header_branch
                  %1347 = sbr.rel (%p1344) target = $region97
                $region94: #{autoencoder_forward.1} parent=89 // loop_body
                  %v1351 = vld [vmem:[%s1349] sm:$0xff]
                  %1352 = vst [vmem:[%s1350] sm:$0xff] %v1351
                  %v1353 = vld [vmem:[%s1349 + $0x8] sm:$0xff]
                  %1354 = vst [vmem:[%s1350 + $0x8] sm:$0xff] %v1353
                  %v1355 = vld [vmem:[%s1349 + $0x10] sm:$0xff]
                  %1356 = vst [vmem:[%s1350 + $0x10] sm:$0xff] %v1355
                  %v1357 = vld [vmem:[%s1349 + $0x18] sm:$0xff]
                  %1358 = vst [vmem:[%s1350 + $0x18] sm:$0xff] %v1357
                  %v1359 = vld [vmem:[%s1349 + $0x20] sm:$0xff]
                  %1360 = vst [vmem:[%s1350 + $0x20] sm:$0xff] %v1359
                  %v1361 = vld [vmem:[%s1349 + $0x28] sm:$0xff]
                  %1362 = vst [vmem:[%s1350 + $0x28] sm:$0xff] %v1361
                  %v1363 = vld [vmem:[%s1349 + $0x30] sm:$0xff]
                  %1364 = vst [vmem:[%s1350 + $0x30] sm:$0xff] %v1363
                  %v1365 = vld [vmem:[%s1349 + $0x38] sm:$0xff]
                  %1366 = vst [vmem:[%s1350 + $0x38] sm:$0xff] %v1365
                  %v1367 = vld [vmem:[%s1349 + $0x40] sm:$0xff]
                  %1368 = vst [vmem:[%s1350 + $0x40] sm:$0xff] %v1367
                  %v1369 = vld [vmem:[%s1349 + $0x48] sm:$0xff]
                  %1370 = vst [vmem:[%s1350 + $0x48] sm:$0xff] %v1369
                  %v1371 = vld [vmem:[%s1349 + $0x50] sm:$0xff]
                  %1372 = vst [vmem:[%s1350 + $0x50] sm:$0xff] %v1371
                  %v1373 = vld [vmem:[%s1349 + $0x58] sm:$0xff]
                  %1374 = vst [vmem:[%s1350 + $0x58] sm:$0xff] %v1373
                  %v1375 = vld [vmem:[%s1349 + $0x60] sm:$0xff]
                  %1376 = vst [vmem:[%s1350 + $0x60] sm:$0xff] %v1375
                  %v1377 = vld [vmem:[%s1349 + $0x68] sm:$0xff]
                  %1378 = vst [vmem:[%s1350 + $0x68] sm:$0xff] %v1377
                  %v1379 = vld [vmem:[%s1349 + $0x70] sm:$0xff]
                  %1380 = vst [vmem:[%s1350 + $0x70] sm:$0xff] %v1379
                  %v1381 = vld [vmem:[%s1349 + $0x78] sm:$0xff]
                  %1382 = vst [vmem:[%s1350 + $0x78] sm:$0xff] %v1381
                  %s1383 = sadd.s32 1, %s1348
                  %p1384 = scmp.ge.s32.totalorder %s1383, %s1341
                  %s1385 = scalar_select %p1384, 0, %s1383
                  %s1386 = smul.u32 %s1385, 128
                  %s1387 = smul.u32 %s1385, 128
                  %s1388 = scalar_lea.vmem %s1245, %s1386 [#allocation2]
                  %s1389 = scalar_lea.vmem %s1256, %s1387
                $region95: #{autoencoder_forward.1} parent=89 // loop_footer
                  %s1345 = sadd.s32 %s1343, 1
                $region96: #{autoencoder_forward.1} parent=89 // loop_footer_branch
                  %1342 = sbr.rel target = $region92
                $region97: #{autoencoder_forward.1} parent=89 // loop_exit
                  _
                %s1390 = sshrl.u32 %s1252, 4
                %s1391 = sand.u32 %s1252, 15
                %s1392 = smul.u32 %s1390, 16
                %s1393 = smul.u32 8, %s1392
                %s1394 = scalar_lea.vmem %s1245, %s1393 [#allocation2]
                %s1395 = smul.u32 8, %s1392
                %s1396 = scalar_lea.vmem %s1256, %s1395
                // While loop
                $region98: #{autoencoder_forward.1} parent=89 // loop_pre_header
                  _
                $region99: #{autoencoder_forward.1} parent=89 // loop_header
                  %s1398 = sphi 0, %s1400
                  %p1399 = scmp.ge.s32.totalorder %s1398, %s1391
                  %s1403 = sphi 0, %s1410
                  %s1404 = sphi %s1394, %s1413
                  %s1405 = sphi %s1396, %s1414
                $region100: #{autoencoder_forward.1} parent=89 // loop_header_branch
                  %1402 = sbr.rel (%p1399) target = $region104
                $region101: #{autoencoder_forward.1} parent=89 // loop_body
                  %v1406 = vld [vmem:[%s1404] sm:$0xff]
                  %1407 = vst [vmem:[%s1405] sm:$0xff] %v1406
                  %s1408 = sadd.s32 1, %s1403
                  %p1409 = scmp.ge.s32.totalorder %s1408, %s1391
                  %s1410 = scalar_select %p1409, 0, %s1408
                  %s1411 = smul.u32 %s1410, 8
                  %s1412 = smul.u32 %s1410, 8
                  %s1413 = scalar_lea.vmem %s1394, %s1411 [#allocation2]
                  %s1414 = scalar_lea.vmem %s1396, %s1412
                $region102: #{autoencoder_forward.1} parent=89 // loop_footer
                  %s1400 = sadd.s32 %s1398, 1
                $region103: #{autoencoder_forward.1} parent=89 // loop_footer_branch
                  %1397 = sbr.rel target = $region99
                $region104: #{autoencoder_forward.1} parent=89 // loop_exit
                  _
              $region90: #{autoencoder_forward.1} parent=67 // pred_fallthru
                _
              // Predicated region
              $region105: #{autoencoder_forward.1} parent=67 // pred_check
                _
              $region106: #{autoencoder_forward.1} parent=67 // pred_check_branch
                %1416 = sbr.rel target = $region108
              $region107: #{autoencoder_forward.1} parent=67 // pred_region
                _
              $region108: #{autoencoder_forward.1} parent=67 // pred_fallthru
                _
            $region68: #{autoencoder_forward.1} parent=63 // pred_fallthru
              _
            // Predicated region
            $region69: #{autoencoder_forward.1} parent=63 // pred_check
              _
            $region70: #{autoencoder_forward.1} parent=63 // pred_check_branch
              %1263 = sbr.rel target = $region72
            $region71: #{autoencoder_forward.1} parent=63 // pred_region
              %s1265 = sshrl.u32 %s1252, 4
              // While loop
              $region73: #{autoencoder_forward.1} parent=71 // loop_pre_header
                _
              $region74: #{autoencoder_forward.1} parent=71 // loop_header
                %s1267 = sphi 0, %s1269
                %p1268 = scmp.ge.s32.totalorder %s1267, %s1265
                %s1272 = sphi 0, %s1309
                %s1273 = sphi %s1245, %s1312
                %s1274 = sphi %s1256, %s1313
              $region75: #{autoencoder_forward.1} parent=71 // loop_header_branch
                %1271 = sbr.rel (%p1268) target = $region79
              $region76: #{autoencoder_forward.1} parent=71 // loop_body
                %v1275 = vld [vmem:[%s1273] sm:$0xff]
                %1276 = vst [vmem:[%s1274] sm:$0xff] %v1275
                %v1277 = vld [vmem:[%s1273 + $0x8] sm:$0xff]
                %1278 = vst [vmem:[%s1274 + $0x8] sm:$0xff] %v1277
                %v1279 = vld [vmem:[%s1273 + $0x10] sm:$0xff]
                %1280 = vst [vmem:[%s1274 + $0x10] sm:$0xff] %v1279
                %v1281 = vld [vmem:[%s1273 + $0x18] sm:$0xff]
                %1282 = vst [vmem:[%s1274 + $0x18] sm:$0xff] %v1281
                %v1283 = vld [vmem:[%s1273 + $0x20] sm:$0xff]
                %1284 = vst [vmem:[%s1274 + $0x20] sm:$0xff] %v1283
                %v1285 = vld [vmem:[%s1273 + $0x28] sm:$0xff]
                %1286 = vst [vmem:[%s1274 + $0x28] sm:$0xff] %v1285
                %v1287 = vld [vmem:[%s1273 + $0x30] sm:$0xff]
                %1288 = vst [vmem:[%s1274 + $0x30] sm:$0xff] %v1287
                %v1289 = vld [vmem:[%s1273 + $0x38] sm:$0xff]
                %1290 = vst [vmem:[%s1274 + $0x38] sm:$0xff] %v1289
                %v1291 = vld [vmem:[%s1273 + $0x40] sm:$0xff]
                %1292 = vst [vmem:[%s1274 + $0x40] sm:$0xff] %v1291
                %v1293 = vld [vmem:[%s1273 + $0x48] sm:$0xff]
                %1294 = vst [vmem:[%s1274 + $0x48] sm:$0xff] %v1293
                %v1295 = vld [vmem:[%s1273 + $0x50] sm:$0xff]
                %1296 = vst [vmem:[%s1274 + $0x50] sm:$0xff] %v1295
                %v1297 = vld [vmem:[%s1273 + $0x58] sm:$0xff]
                %1298 = vst [vmem:[%s1274 + $0x58] sm:$0xff] %v1297
                %v1299 = vld [vmem:[%s1273 + $0x60] sm:$0xff]
                %1300 = vst [vmem:[%s1274 + $0x60] sm:$0xff] %v1299
                %v1301 = vld [vmem:[%s1273 + $0x68] sm:$0xff]
                %1302 = vst [vmem:[%s1274 + $0x68] sm:$0xff] %v1301
                %v1303 = vld [vmem:[%s1273 + $0x70] sm:$0xff]
                %1304 = vst [vmem:[%s1274 + $0x70] sm:$0xff] %v1303
                %v1305 = vld [vmem:[%s1273 + $0x78] sm:$0xff]
                %1306 = vst [vmem:[%s1274 + $0x78] sm:$0xff] %v1305
                %s1307 = sadd.s32 1, %s1272
                %p1308 = scmp.ge.s32.totalorder %s1307, %s1265
                %s1309 = scalar_select %p1308, 0, %s1307
                %s1310 = smul.u32 %s1309, 128
                %s1311 = smul.u32 %s1309, 128
                %s1312 = scalar_lea.vmem %s1245, %s1310 [#allocation2]
                %s1313 = scalar_lea.vmem %s1256, %s1311
              $region77: #{autoencoder_forward.1} parent=71 // loop_footer
                %s1269 = sadd.s32 %s1267, 1
              $region78: #{autoencoder_forward.1} parent=71 // loop_footer_branch
                %1266 = sbr.rel target = $region74
              $region79: #{autoencoder_forward.1} parent=71 // loop_exit
                _
              %s1314 = sshrl.u32 %s1252, 4
              %s1315 = sand.u32 %s1252, 15
              %s1316 = smul.u32 %s1314, 16
              %s1317 = smul.u32 8, %s1316
              %s1318 = scalar_lea.vmem %s1245, %s1317 [#allocation2]
              %s1319 = smul.u32 8, %s1316
              %s1320 = scalar_lea.vmem %s1256, %s1319
              // While loop
              $region80: #{autoencoder_forward.1} parent=71 // loop_pre_header
                _
              $region81: #{autoencoder_forward.1} parent=71 // loop_header
                %s1322 = sphi 0, %s1324
                %p1323 = scmp.ge.s32.totalorder %s1322, %s1315
                %s1327 = sphi 0, %s1334
                %s1328 = sphi %s1318, %s1337
                %s1329 = sphi %s1320, %s1338
              $region82: #{autoencoder_forward.1} parent=71 // loop_header_branch
                %1326 = sbr.rel (%p1323) target = $region86
              $region83: #{autoencoder_forward.1} parent=71 // loop_body
                %v1330 = vld [vmem:[%s1328] sm:$0xff]
                %1331 = vst [vmem:[%s1329] sm:$0xff] %v1330
                %s1332 = sadd.s32 1, %s1327
                %p1333 = scmp.ge.s32.totalorder %s1332, %s1315
                %s1334 = scalar_select %p1333, 0, %s1332
                %s1335 = smul.u32 %s1334, 8
                %s1336 = smul.u32 %s1334, 8
                %s1337 = scalar_lea.vmem %s1318, %s1335 [#allocation2]
                %s1338 = scalar_lea.vmem %s1320, %s1336
              $region84: #{autoencoder_forward.1} parent=71 // loop_footer
                %s1324 = sadd.s32 %s1322, 1
              $region85: #{autoencoder_forward.1} parent=71 // loop_footer_branch
                %1321 = sbr.rel target = $region81
              $region86: #{autoencoder_forward.1} parent=71 // loop_exit
                _
            $region72: #{autoencoder_forward.1} parent=63 // pred_fallthru
              _
          $region64: #{autoencoder_forward.1} parent=59 // pred_fallthru
            _
          %1417 = vnop
        $region60: #{autoencoder_forward.1} parent=55 // pred_fallthru
          _
      $region56: #{autoencoder_forward.1} parent=5 // pred_fallthru
        _
      %p1418 = scmp.le.s32.totalorder 2, %s15
      // Predicated region
      $region109: #{autoencoder_forward.1} parent=5 // pred_check
        %p1419 = pneg %p1418
      $region110: #{autoencoder_forward.1} parent=5 // pred_check_branch
        %1421 = sbr.rel (%p1419) target = $region112
      $region111: #{autoencoder_forward.1} parent=5 // pred_region
        %s1422 = ssub.s32 %s15, 2
        // Predicated region
        $region113: #{autoencoder_forward.1} parent=111 // pred_check
          %p1423 = pneg %p238
        $region114: #{autoencoder_forward.1} parent=111 // pred_check_branch
          %1425 = sbr.rel (%p1423) target = $region116
        $region115: #{autoencoder_forward.1} parent=111 // pred_region
          %s1426 = sand.u32 %s223, 1
          %s1427 = sand.u32 %s223, 1
          %s1428 = smul.addr %s1427, 128
          %s1429 = scalar_lea.vmem [#allocation2], %s1428
        $region116: #{autoencoder_forward.1} parent=111 // pred_fallthru
          _
      $region112: #{autoencoder_forward.1} parent=5 // pred_fallthru
        _
    $region6: #{autoencoder_forward.1} parent=1 // loop_footer
      %s19 = sadd.s32 1, %s15
    $region7: #{autoencoder_forward.1} parent=1 // loop_footer_branch
      %14 = sbr.rel target = $region3
    $region8: #{autoencoder_forward.1} parent=1 // loop_exit
      _

</llo_original>
